<compile_context>
chip_gen: v7x
topology: tpu7x:2x2x1
jax: 0.10.0
libtpu: 0.0.40
codegen_flags: <defaults>
</compile_context>

<pallas_src>
import functools

import jax
import jax.numpy as jnp
import numpy as np
from jax.experimental import pallas as pl
from jax.experimental.pallas import tpu as pltpu

LANE = 128
SUBLANE = 8


def _round_up(x, m):
    return ((x + m - 1) // m) * m


# -----------------------------------------------------------------------------
# Fused multi-layer R-GCN kernel (single dispatch, everything VMEM resident).
# -----------------------------------------------------------------------------
def fused_rgcn_kernel(a_ref, h_ref, *rest, n_rels, d_out_pads, relu_flags):
    """All GNN layers in one kernel.

    a_ref : (R * N_pad, N_pad) int8   relation-stacked dense adjacency
                                      (rows [r*N_pad : (r+1)*N_pad) = A_r).
                                      No identity relation: self-loop handled
                                      through W_self.
    h_ref : (N_pad, D0_pad)    f32    padded input node features.
    rest  : (W_cat_0, b_0, ..., W_cat_{L-1}, b_{L-1}, out_ref)
        W_cat_l : (D_in_pad, (R+1)*D_out_pad) f32
                  cols [0:D)            -> W_self
                  cols [(r+1)D:(r+2)D)  -> W_r
        b_l     : (1, D_out_pad) f32
    out_ref : (N_pad, D_last_pad) f32
    """
    out_ref = rest[-1]
    wb_refs = rest[:-1]
    n_layers = len(d_out_pads)
    n_pad = a_ref.shape[1]

    # int8 adjacency (exact small edge counts) widened once in VMEM.
    a = a_ref[...].astype(jnp.float32)                       # (R*N_pad, N_pad)
    h = h_ref[...]                                           # (N_pad, D0_pad)

    for l in range(n_layers):
        w_cat = wb_refs[2 * l][...]                          # (D_in, (R+1)*D)
        bias = wb_refs[2 * l + 1][...]                       # (1, D)
        d_out = d_out_pads[l]

        # One MXU matmul produces the self term and every per-relation
        # transformed feature block:  hw = h @ [W_self | W_0 | ... | W_{R-1}].
        hw = jnp.dot(h, w_cat, preferred_element_type=jnp.float32)

        acc = hw[:, :d_out]                                  # self-loop term
        for r in range(n_rels):                              # unrolled (static)
            a_r = a[r * n_pad:(r + 1) * n_pad, :]            # (N_pad, N_pad)
            hw_r = hw[:, (r + 1) * d_out:(r + 2) * d_out]    # (N_pad, d_out)
            acc = acc + jnp.dot(a_r, hw_r,
                                preferred_element_type=jnp.float32)

        acc = acc + bias
        if relu_flags[l]:
            acc = jnp.maximum(acc, 0.0)
        # Note: padded rows (n >= N) carry relu(bias) junk between layers;
        # harmless because real rows only read columns < N of A and the final
        # slice drops the padded rows.
        h = acc

    out_ref[...] = h


def fused_rgcn_forward(a_i8, h0_pad, w_cats, biases, *,
                       n_rels, d_out_pads, relu_flags):
    """Single pallas_call, grid-less (one invocation), whole arrays in VMEM."""
    operands = [a_i8, h0_pad]
    for w, b in zip(w_cats, biases):
        operands.extend([w, b])
    n_pad = h0_pad.shape[0]

    kernel = functools.partial(
        fused_rgcn_kernel,
        n_rels=n_rels,
        d_out_pads=tuple(d_out_pads),
        relu_flags=tuple(relu_flags),
    )
    return pl.pallas_call(
        kernel,
        out_shape=jax.ShapeDtypeStruct((n_pad, d_out_pads[-1]), jnp.float32),
        in_specs=[pl.BlockSpec(memory_space=pltpu.MemorySpace.VMEM)] * len(operands),
        out_specs=pl.BlockSpec(memory_space=pltpu.MemorySpace.VMEM),
    )(*operands)


# -----------------------------------------------------------------------------
# Model glue (mirrors Model.build_model / layer_build_args / forward)
# -----------------------------------------------------------------------------
def layer_build_args(node_dim, edge_dim, n_classes, layer_params):
    """Simplified port of layer_build_args for NODE_CLASSIFICATION mode
    (scalar layer_params, as in the shipped config)."""
    n_layers = layer_params['n_hidden_layers']
    n_units = layer_params['n_units']
    activation = layer_params['activation']
    cfgs = [(node_dim, edge_dim, n_units, activation)]
    for _ in range(n_layers - 1):
        cfgs.append((n_units, edge_dim, n_units, activation))
    cfgs.append((n_units, edge_dim, n_classes, None))        # final classifier
    return cfgs


def build_params(key, layer_cfgs, n_rels, n_node_degs, node_dim):
    """Deterministic parameter init (synthetic, no checkpoint)."""
    params = {}
    key, k = jax.random.split(key)
    params['embed_nodes'] = jax.random.normal(
        k, (n_node_degs, node_dim), jnp.float32) * 0.1
    params['layers'] = []
    for (d_in, _edge_dim, d_out, _act) in layer_cfgs:
        key, k1, k2, k3 = jax.random.split(key, 4)
        params['layers'].append(dict(
            w_rel=jax.random.normal(k1, (n_rels, d_in, d_out), jnp.float32) * 0.1,
            w_self=jax.random.normal(k2, (d_in, d_out), jnp.float32) * 0.1,
            b=jax.random.normal(k3, (1, d_out), jnp.float32) * 0.1,
        ))
    return params


def prepare_kernel_inputs(params, layer_cfgs, a_rel):
    """Pack everything the fused kernel needs.  Runs ONCE, outside the jitted
    forward (adjacency packing / weight concatenation are call-invariant)."""
    n_rels, n_nodes, _ = a_rel.shape
    n_pad = _round_up(n_nodes, SUBLANE)

    # Relation-stacked adjacency, int8, no identity relation.
    a_np = np.asarray(a_rel)
    a_i8 = np.zeros((n_rels * n_pad, n_pad), np.int8)
    for r in range(n_rels):
        a_i8[r * n_pad:r * n_pad + n_nodes, :n_nodes] = a_np[r].astype(np.int8)
    a_i8 = jnp.asarray(a_i8)

    w_cats, biases, d_out_pads, relu_flags = [], [], [], []
    d_in0_pad = _round_up(layer_cfgs[0][0], LANE)
    prev_out_pad = d_in0_pad
    for cfg, p in zip(layer_cfgs, params['layers']):
        d_in, _edge_dim, d_out, act = cfg
        d_in_pad = _round_up(d_in, LANE)
        d_out_pad = _round_up(d_out, LANE)
        assert d_in_pad == prev_out_pad
        w_cat = jnp.zeros((d_in_pad, (n_rels + 1) * d_out_pad), jnp.float32)
        w_cat = w_cat.at[:d_in, :d_out].set(p['w_self'])
        for r in range(n_rels):
            c0 = (r + 1) * d_out_pad
            w_cat = w_cat.at[:d_in, c0:c0 + d_out].set(p['w_rel'][r])
        b_pad = jnp.zeros((1, d_out_pad), jnp.float32).at[:, :d_out].set(p['b'])
        w_cats.append(w_cat)
        biases.append(b_pad)
        d_out_pads.append(d_out_pad)
        relu_flags.append(act == 'relu')
        prev_out_pad = d_out_pad

    meta = dict(n_rels=n_rels, n_nodes=n_nodes, n_pad=n_pad,
                d_in0_pad=d_in0_pad, d_out_pads=tuple(d_out_pads),
                relu_flags=tuple(relu_flags))
    return a_i8, tuple(w_cats), tuple(biases), meta


def model_forward(embed_table, node_labels, a_i8, w_cats, biases, *,
                  n_nodes, n_pad, d_in0_pad, n_classes,
                  n_rels, d_out_pads, relu_flags):
    """Forward pass of `Model` (NODE_CLASSIFICATION).  Embedding lookup is
    plain-JAX index glue; all GNN layers run inside ONE fused Pallas kernel."""
    node_dim = embed_table.shape[1]
    h0 = embed_table[node_labels]                            # nn.Embedding lookup
    h0_pad = jnp.zeros((n_pad, d_in0_pad), jnp.float32)
    h0_pad = h0_pad.at[:n_nodes, :node_dim].set(h0)
    out_pad = fused_rgcn_forward(a_i8, h0_pad, w_cats, biases,
                                 n_rels=n_rels, d_out_pads=d_out_pads,
                                 relu_flags=relu_flags)
    return out_pad[:n_nodes, :n_classes]


def reference_forward(params, node_labels, a_rel, layer_cfgs):
    """Pure-JAX f32 reference of the R-GCN forward."""
    with jax.default_matmul_precision('highest'):
        h = params['embed_nodes'][node_labels]
        for cfg, p in zip(layer_cfgs, params['layers']):
            act = cfg[3]
            hw = jnp.einsum('mk,rko->rmo', h, p['w_rel'])
            msg = jnp.einsum('rnm,rmo->no', a_rel, hw)
            out = h @ p['w_self'] + msg + p['b']
            if act == 'relu':
                out = jnp.maximum(out, 0.0)
            h = out
        return h


# -----------------------------------------------------------------------------
if __name__ == "__main__":
    key = jax.random.PRNGKey(0)

    # Synthetic graph / config (small shapes, NODE_CLASSIFICATION mode).
    N_NODES = 16
    N_EDGES = 48
    N_RELS = 4          # edge_one_hot -> edge_dim = n_rels
    NODE_DIM = 8
    N_CLASSES = 8
    layer_params = {'n_units': 32, 'n_hidden_layers': 2, 'activation': 'relu'}

    key, ks, kd, ke = jax.random.split(key, 4)
    src = jax.random.randint(ks, (N_EDGES,), 0, N_NODES)
    dst = jax.random.randint(kd, (N_EDGES,), 0, N_NODES)
    etype = jax.random.randint(ke, (N_EDGES,), 0, N_RELS)

    # compute_node_degrees -> degree ids used as node labels (Model.build_model).
    deg = jnp.zeros((N_NODES,), jnp.int32).at[dst].add(1)
    node_labels = deg
    n_node_degs = int(jnp.max(node_labels)) + 1

    # Dense per-relation adjacency: A_r[d, s] = #edges s->d of relation r.
    a_rel = jnp.zeros((N_RELS, N_NODES, N_NODES), jnp.float32)
    a_rel = a_rel.at[etype, dst, src].add(1.0)

    layer_cfgs = layer_build_args(NODE_DIM, N_RELS, N_CLASSES, layer_params)
    params = build_params(key, layer_cfgs, N_RELS, n_node_degs, NODE_DIM)

    # Constant-across-calls packing done once, outside jit.
    a_i8, w_cats, biases, meta = prepare_kernel_inputs(params, layer_cfgs, a_rel)

    fwd = jax.jit(functools.partial(
        model_forward,
        n_nodes=meta['n_nodes'], n_pad=meta['n_pad'],
        d_in0_pad=meta['d_in0_pad'], n_classes=N_CLASSES,
        n_rels=meta['n_rels'], d_out_pads=meta['d_out_pads'],
        relu_flags=meta['relu_flags']))

    out = jax.block_until_ready(
        fwd(params['embed_nodes'], node_labels, a_i8, w_cats, biases))

    ref = reference_forward(params, node_labels, a_rel, layer_cfgs)
    np.testing.assert_allclose(np.asarray(out), np.asarray(ref),
                               rtol=1e-2, atol=1e-2)
    assert out.shape == (N_NODES, N_CLASSES)

    print("KERNEL_OK")
</pallas_src>

<mosaic_0001>
module attributes {stable_mosaic.version = 11 : i64} {
  func.func @fused_rgcn_kernel(%arg0: memref<64x16xi8, #tpu.memory_space<vmem>>, %arg1: memref<16x128xf32, #tpu.memory_space<vmem>>, %arg2: memref<128x640xf32, #tpu.memory_space<vmem>>, %arg3: memref<1x128xf32, #tpu.memory_space<vmem>>, %arg4: memref<128x640xf32, #tpu.memory_space<vmem>>, %arg5: memref<1x128xf32, #tpu.memory_space<vmem>>, %arg6: memref<128x640xf32, #tpu.memory_space<vmem>>, %arg7: memref<1x128xf32, #tpu.memory_space<vmem>>, %arg8: memref<16x128xf32, #tpu.memory_space<vmem>>) attributes {dimension_semantics = [], scalar_prefetch = 0 : i64, scratch_operands = 0 : i64, tpu.core_type = #tpu.core_type<tc>} {
    %c0 = arith.constant 0 : index
    %c0_0 = arith.constant 0 : index
    %0 = vector.load %arg0[%c0, %c0_0] : memref<64x16xi8, #tpu.memory_space<vmem>>, vector<64x16xi8>
    %1 = arith.sitofp %0 : vector<64x16xi8> to vector<64x16xf32>
    %c0_1 = arith.constant 0 : index
    %c0_2 = arith.constant 0 : index
    %2 = vector.load %arg1[%c0_1, %c0_2] : memref<16x128xf32, #tpu.memory_space<vmem>>, vector<16x128xf32>
    %c0_3 = arith.constant 0 : index
    %c0_4 = arith.constant 0 : index
    %3 = vector.load %arg2[%c0_3, %c0_4] : memref<128x640xf32, #tpu.memory_space<vmem>>, vector<128x640xf32>
    %c0_5 = arith.constant 0 : index
    %c0_6 = arith.constant 0 : index
    %4 = vector.load %arg3[%c0_5, %c0_6] : memref<1x128xf32, #tpu.memory_space<vmem>>, vector<1x128xf32>
    %cst = arith.constant dense<0.000000e+00> : vector<16x640xf32>
    %5 = tpu.matmul %2, %3, %cst {dimension_numbers = #tpu.dot_dimension_numbers<[1], [0], [0], [1], [0, 0, 1, 1], [], []>} : vector<16x128xf32>, vector<128x640xf32>, vector<16x640xf32> -> vector<16x640xf32>
    %6 = vector.extract_strided_slice %5 {offsets = [0, 0], sizes = [16, 128], strides = [1, 1]} : vector<16x640xf32> to vector<16x128xf32>
    %7 = vector.extract_strided_slice %1 {offsets = [0, 0], sizes = [16, 16], strides = [1, 1]} : vector<64x16xf32> to vector<16x16xf32>
    %8 = vector.extract_strided_slice %5 {offsets = [0, 128], sizes = [16, 128], strides = [1, 1]} : vector<16x640xf32> to vector<16x128xf32>
    %cst_7 = arith.constant dense<0.000000e+00> : vector<16x128xf32>
    %9 = tpu.matmul %7, %8, %cst_7 {dimension_numbers = #tpu.dot_dimension_numbers<[1], [0], [0], [1], [0, 0, 1, 1], [], []>} : vector<16x16xf32>, vector<16x128xf32>, vector<16x128xf32> -> vector<16x128xf32>
    %10 = arith.addf %6, %9 : vector<16x128xf32>
    %11 = vector.extract_strided_slice %1 {offsets = [16, 0], sizes = [16, 16], strides = [1, 1]} : vector<64x16xf32> to vector<16x16xf32>
    %12 = vector.extract_strided_slice %5 {offsets = [0, 256], sizes = [16, 128], strides = [1, 1]} : vector<16x640xf32> to vector<16x128xf32>
    %cst_8 = arith.constant dense<0.000000e+00> : vector<16x128xf32>
    %13 = tpu.matmul %11, %12, %cst_8 {dimension_numbers = #tpu.dot_dimension_numbers<[1], [0], [0], [1], [0, 0, 1, 1], [], []>} : vector<16x16xf32>, vector<16x128xf32>, vector<16x128xf32> -> vector<16x128xf32>
    %14 = arith.addf %10, %13 : vector<16x128xf32>
    %15 = vector.extract_strided_slice %1 {offsets = [32, 0], sizes = [16, 16], strides = [1, 1]} : vector<64x16xf32> to vector<16x16xf32>
    %16 = vector.extract_strided_slice %5 {offsets = [0, 384], sizes = [16, 128], strides = [1, 1]} : vector<16x640xf32> to vector<16x128xf32>
    %cst_9 = arith.constant dense<0.000000e+00> : vector<16x128xf32>
    %17 = tpu.matmul %15, %16, %cst_9 {dimension_numbers = #tpu.dot_dimension_numbers<[1], [0], [0], [1], [0, 0, 1, 1], [], []>} : vector<16x16xf32>, vector<16x128xf32>, vector<16x128xf32> -> vector<16x128xf32>
    %18 = arith.addf %14, %17 : vector<16x128xf32>
    %19 = vector.extract_strided_slice %1 {offsets = [48, 0], sizes = [16, 16], strides = [1, 1]} : vector<64x16xf32> to vector<16x16xf32>
    %20 = vector.extract_strided_slice %5 {offsets = [0, 512], sizes = [16, 128], strides = [1, 1]} : vector<16x640xf32> to vector<16x128xf32>
    %cst_10 = arith.constant dense<0.000000e+00> : vector<16x128xf32>
    %21 = tpu.matmul %19, %20, %cst_10 {dimension_numbers = #tpu.dot_dimension_numbers<[1], [0], [0], [1], [0, 0, 1, 1], [], []>} : vector<16x16xf32>, vector<16x128xf32>, vector<16x128xf32> -> vector<16x128xf32>
    %22 = arith.addf %18, %21 : vector<16x128xf32>
    %23 = vector.broadcast %4 : vector<1x128xf32> to vector<16x128xf32>
    %24 = arith.addf %22, %23 : vector<16x128xf32>
    %cst_11 = arith.constant 0.000000e+00 : f32
    %25 = vector.broadcast %cst_11 : f32 to vector<16x128xf32>
    %26 = arith.maximumf %24, %25 : vector<16x128xf32>
    %c0_12 = arith.constant 0 : index
    %c0_13 = arith.constant 0 : index
    %27 = vector.load %arg4[%c0_12, %c0_13] : memref<128x640xf32, #tpu.memory_space<vmem>>, vector<128x640xf32>
    %c0_14 = arith.constant 0 : index
    %c0_15 = arith.constant 0 : index
    %28 = vector.load %arg5[%c0_14, %c0_15] : memref<1x128xf32, #tpu.memory_space<vmem>>, vector<1x128xf32>
    %cst_16 = arith.constant dense<0.000000e+00> : vector<16x640xf32>
    %29 = tpu.matmul %26, %27, %cst_16 {dimension_numbers = #tpu.dot_dimension_numbers<[1], [0], [0], [1], [0, 0, 1, 1], [], []>} : vector<16x128xf32>, vector<128x640xf32>, vector<16x640xf32> -> vector<16x640xf32>
    %30 = vector.extract_strided_slice %29 {offsets = [0, 0], sizes = [16, 128], strides = [1, 1]} : vector<16x640xf32> to vector<16x128xf32>
    %31 = vector.extract_strided_slice %1 {offsets = [0, 0], sizes = [16, 16], strides = [1, 1]} : vector<64x16xf32> to vector<16x16xf32>
    %32 = vector.extract_strided_slice %29 {offsets = [0, 128], sizes = [16, 128], strides = [1, 1]} : vector<16x640xf32> to vector<16x128xf32>
    %cst_17 = arith.constant dense<0.000000e+00> : vector<16x128xf32>
    %33 = tpu.matmul %31, %32, %cst_17 {dimension_numbers = #tpu.dot_dimension_numbers<[1], [0], [0], [1], [0, 0, 1, 1], [], []>} : vector<16x16xf32>, vector<16x128xf32>, vector<16x128xf32> -> vector<16x128xf32>
    %34 = arith.addf %30, %33 : vector<16x128xf32>
    %35 = vector.extract_strided_slice %1 {offsets = [16, 0], sizes = [16, 16], strides = [1, 1]} : vector<64x16xf32> to vector<16x16xf32>
    %36 = vector.extract_strided_slice %29 {offsets = [0, 256], sizes = [16, 128], strides = [1, 1]} : vector<16x640xf32> to vector<16x128xf32>
    %cst_18 = arith.constant dense<0.000000e+00> : vector<16x128xf32>
    %37 = tpu.matmul %35, %36, %cst_18 {dimension_numbers = #tpu.dot_dimension_numbers<[1], [0], [0], [1], [0, 0, 1, 1], [], []>} : vector<16x16xf32>, vector<16x128xf32>, vector<16x128xf32> -> vector<16x128xf32>
    %38 = arith.addf %34, %37 : vector<16x128xf32>
    %39 = vector.extract_strided_slice %1 {offsets = [32, 0], sizes = [16, 16], strides = [1, 1]} : vector<64x16xf32> to vector<16x16xf32>
    %40 = vector.extract_strided_slice %29 {offsets = [0, 384], sizes = [16, 128], strides = [1, 1]} : vector<16x640xf32> to vector<16x128xf32>
    %cst_19 = arith.constant dense<0.000000e+00> : vector<16x128xf32>
    %41 = tpu.matmul %39, %40, %cst_19 {dimension_numbers = #tpu.dot_dimension_numbers<[1], [0], [0], [1], [0, 0, 1, 1], [], []>} : vector<16x16xf32>, vector<16x128xf32>, vector<16x128xf32> -> vector<16x128xf32>
    %42 = arith.addf %38, %41 : vector<16x128xf32>
    %43 = vector.extract_strided_slice %1 {offsets = [48, 0], sizes = [16, 16], strides = [1, 1]} : vector<64x16xf32> to vector<16x16xf32>
    %44 = vector.extract_strided_slice %29 {offsets = [0, 512], sizes = [16, 128], strides = [1, 1]} : vector<16x640xf32> to vector<16x128xf32>
    %cst_20 = arith.constant dense<0.000000e+00> : vector<16x128xf32>
    %45 = tpu.matmul %43, %44, %cst_20 {dimension_numbers = #tpu.dot_dimension_numbers<[1], [0], [0], [1], [0, 0, 1, 1], [], []>} : vector<16x16xf32>, vector<16x128xf32>, vector<16x128xf32> -> vector<16x128xf32>
    %46 = arith.addf %42, %45 : vector<16x128xf32>
    %47 = vector.broadcast %28 : vector<1x128xf32> to vector<16x128xf32>
    %48 = arith.addf %46, %47 : vector<16x128xf32>
    %cst_21 = arith.constant 0.000000e+00 : f32
    %49 = vector.broadcast %cst_21 : f32 to vector<16x128xf32>
    %50 = arith.maximumf %48, %49 : vector<16x128xf32>
    %c0_22 = arith.constant 0 : index
    %c0_23 = arith.constant 0 : index
    %51 = vector.load %arg6[%c0_22, %c0_23] : memref<128x640xf32, #tpu.memory_space<vmem>>, vector<128x640xf32>
    %c0_24 = arith.constant 0 : index
    %c0_25 = arith.constant 0 : index
    %52 = vector.load %arg7[%c0_24, %c0_25] : memref<1x128xf32, #tpu.memory_space<vmem>>, vector<1x128xf32>
    %cst_26 = arith.constant dense<0.000000e+00> : vector<16x640xf32>
    %53 = tpu.matmul %50, %51, %cst_26 {dimension_numbers = #tpu.dot_dimension_numbers<[1], [0], [0], [1], [0, 0, 1, 1], [], []>} : vector<16x128xf32>, vector<128x640xf32>, vector<16x640xf32> -> vector<16x640xf32>
    %54 = vector.extract_strided_slice %53 {offsets = [0, 0], sizes = [16, 128], strides = [1, 1]} : vector<16x640xf32> to vector<16x128xf32>
    %55 = vector.extract_strided_slice %1 {offsets = [0, 0], sizes = [16, 16], strides = [1, 1]} : vector<64x16xf32> to vector<16x16xf32>
    %56 = vector.extract_strided_slice %53 {offsets = [0, 128], sizes = [16, 128], strides = [1, 1]} : vector<16x640xf32> to vector<16x128xf32>
    %cst_27 = arith.constant dense<0.000000e+00> : vector<16x128xf32>
    %57 = tpu.matmul %55, %56, %cst_27 {dimension_numbers = #tpu.dot_dimension_numbers<[1], [0], [0], [1], [0, 0, 1, 1], [], []>} : vector<16x16xf32>, vector<16x128xf32>, vector<16x128xf32> -> vector<16x128xf32>
    %58 = arith.addf %54, %57 : vector<16x128xf32>
    %59 = vector.extract_strided_slice %1 {offsets = [16, 0], sizes = [16, 16], strides = [1, 1]} : vector<64x16xf32> to vector<16x16xf32>
    %60 = vector.extract_strided_slice %53 {offsets = [0, 256], sizes = [16, 128], strides = [1, 1]} : vector<16x640xf32> to vector<16x128xf32>
    %cst_28 = arith.constant dense<0.000000e+00> : vector<16x128xf32>
    %61 = tpu.matmul %59, %60, %cst_28 {dimension_numbers = #tpu.dot_dimension_numbers<[1], [0], [0], [1], [0, 0, 1, 1], [], []>} : vector<16x16xf32>, vector<16x128xf32>, vector<16x128xf32> -> vector<16x128xf32>
    %62 = arith.addf %58, %61 : vector<16x128xf32>
    %63 = vector.extract_strided_slice %1 {offsets = [32, 0], sizes = [16, 16], strides = [1, 1]} : vector<64x16xf32> to vector<16x16xf32>
    %64 = vector.extract_strided_slice %53 {offsets = [0, 384], sizes = [16, 128], strides = [1, 1]} : vector<16x640xf32> to vector<16x128xf32>
    %cst_29 = arith.constant dense<0.000000e+00> : vector<16x128xf32>
    %65 = tpu.matmul %63, %64, %cst_29 {dimension_numbers = #tpu.dot_dimension_numbers<[1], [0], [0], [1], [0, 0, 1, 1], [], []>} : vector<16x16xf32>, vector<16x128xf32>, vector<16x128xf32> -> vector<16x128xf32>
    %66 = arith.addf %62, %65 : vector<16x128xf32>
    %67 = vector.extract_strided_slice %1 {offsets = [48, 0], sizes = [16, 16], strides = [1, 1]} : vector<64x16xf32> to vector<16x16xf32>
    %68 = vector.extract_strided_slice %53 {offsets = [0, 512], sizes = [16, 128], strides = [1, 1]} : vector<16x640xf32> to vector<16x128xf32>
    %cst_30 = arith.constant dense<0.000000e+00> : vector<16x128xf32>
    %69 = tpu.matmul %67, %68, %cst_30 {dimension_numbers = #tpu.dot_dimension_numbers<[1], [0], [0], [1], [0, 0, 1, 1], [], []>} : vector<16x16xf32>, vector<16x128xf32>, vector<16x128xf32> -> vector<16x128xf32>
    %70 = arith.addf %66, %69 : vector<16x128xf32>
    %71 = vector.broadcast %52 : vector<1x128xf32> to vector<16x128xf32>
    %72 = arith.addf %70, %71 : vector<16x128xf32>
    %c0_31 = arith.constant 0 : index
    %c0_32 = arith.constant 0 : index
    %73 = vector.load %arg8[%c0_31, %c0_32] : memref<16x128xf32, #tpu.memory_space<vmem>>, vector<16x128xf32>
    tpu.vector_store %arg8[%c0_31, %c0_32], %72 {strides = array<i32>} : memref<16x128xf32, #tpu.memory_space<vmem>>, vector<16x128xf32>,
    return
  }
}

</mosaic_0001>

<llo_original>
// kernel: model_forward.1
$region0: #{model_forward.1}
  #allocation0 [shape = 'u32[]', space=smem, size = 0x4, offset = 0x4, fixed_abs, tag = 'smem constant byte address 0x4 - core index']
  #allocation1 [shape = 'u32[144,128]{1,0:T(1,128)}', space=vmem, size = 0x12000, scoped, tag = 'internal scratch']
  %s0 = inlined_call_operand.vmem [shape: s8[64,16], index: 0, kind: input, shape index: {}]
  %s1 = inlined_call_operand.vmem [shape: f32[16,128], index: 1, kind: input, shape index: {}]
  %s2 = inlined_call_operand.hbm [shape: f32[128,640], index: 2, kind: input, shape index: {}]
  %s3 = inlined_call_operand.vmem [shape: f32[1,128], index: 3, kind: input, shape index: {}]
  %s4 = inlined_call_operand.hbm [shape: f32[128,640], index: 4, kind: input, shape index: {}]
  %s5 = inlined_call_operand.vmem [shape: f32[1,128], index: 5, kind: input, shape index: {}]
  %s6 = inlined_call_operand.hbm [shape: f32[128,640], index: 6, kind: input, shape index: {}]
  %s7 = inlined_call_operand.vmem [shape: f32[1,128], index: 7, kind: input, shape index: {}]
  %s8 = inlined_call_operand.vmem [shape: f32[16,128], index: 8, kind: output, shape index: {}]
  %s9 = sld [smem:[#allocation0]]
  $region54: #{model_forward.1} parent=0
    _
  %s11 = ssub.s32 1, %s9
  %s12 = scalar_select 0, %s11, %s9
  $region1: #{model_forward.1} parent=0
    #allocation2 [shape = 'u8[327680]{0}', space=vmem, size = 0x50000, scoped, tag = 'input window, operand 2, single buffered']
    #allocation3 [shape = 's32[1]{0}', space=sflag, size = 0x4, scoped, tag = 'scoped memory for model_forward.1']
    #allocation4 [shape = 'u8[327680]{0}', space=vmem, size = 0x50000, scoped, tag = 'input window, operand 4, single buffered']
    #allocation5 [shape = 's32[1]{0}', space=sflag, size = 0x4, scoped, tag = 'scoped memory for model_forward.1']
    #allocation6 [shape = 'u8[327680]{0}', space=vmem, size = 0x50000, scoped, tag = 'input window, operand 6, single buffered']
    %13 = vsyncpa [#allocation3], 0
    %14 = vsyncpa [#allocation5], 0
    // Predicated region
    $region2: #{model_forward.1} parent=1 // pred_check
      _
    $region3: #{model_forward.1} parent=1 // pred_check_branch
      %16 = sbr.rel (0) target = $region5
    $region4: #{model_forward.1} parent=1 // pred_region
      _
    $region5: #{model_forward.1} parent=1 // pred_fallthru
      _
    // Predicated region
    $region6: #{model_forward.1} parent=1 // pred_check
      _
    $region7: #{model_forward.1} parent=1 // pred_check_branch
      %18 = sbr.rel (0) target = $region9
    $region8: #{model_forward.1} parent=1 // pred_region
      _
    $region9: #{model_forward.1} parent=1 // pred_fallthru
      _
    // Predicated region
    $region10: #{model_forward.1} parent=1 // pred_check
      _
    $region11: #{model_forward.1} parent=1 // pred_check_branch
      %20 = sbr.rel (0) target = $region13
    $region12: #{model_forward.1} parent=1 // pred_region
      %s22 = ssub.s32 10240, 10240
      %23 = vsyncadd [#allocation3], %s22
      %s24 = sshll.u32 [#allocation2], 4
      %s25 = int_to_ptr.vmem [resolvable:$true] %s24
      %30 = dma.hbm_to_vmem [thread:$0]  %s2, 10240, %s25, [#allocation3], 640, 640, 40
    $region13: #{model_forward.1} parent=1 // pred_fallthru
      _
    // Predicated region
    $region14: #{model_forward.1} parent=1 // pred_check
      _
    $region15: #{model_forward.1} parent=1 // pred_check_branch
      %32 = sbr.rel (0) target = $region17
    $region16: #{model_forward.1} parent=1 // pred_region
      _
    $region17: #{model_forward.1} parent=1 // pred_fallthru
      _
    // Predicated region
    $region18: #{model_forward.1} parent=1 // pred_check
      _
    $region19: #{model_forward.1} parent=1 // pred_check_branch
      %34 = sbr.rel (0) target = $region21
    $region20: #{model_forward.1} parent=1 // pred_region
      %s36 = ssub.s32 10240, 10240
      %37 = vsyncadd [#allocation5], %s36
      %s38 = sshll.u32 [#allocation4], 4
      %s39 = int_to_ptr.vmem [resolvable:$true] %s38
      %44 = dma.hbm_to_vmem [thread:$0]  %s4, 10240, %s39, [#allocation5], 640, 640, 40
    $region21: #{model_forward.1} parent=1 // pred_fallthru
      _
    // Predicated region
    $region22: #{model_forward.1} parent=1 // pred_check
      _
    $region23: #{model_forward.1} parent=1 // pred_check_branch
      %46 = sbr.rel (0) target = $region25
    $region24: #{model_forward.1} parent=1 // pred_region
      _
    $region25: #{model_forward.1} parent=1 // pred_fallthru
      _
    // Predicated region
    $region26: #{model_forward.1} parent=1 // pred_check
      _
    $region27: #{model_forward.1} parent=1 // pred_check_branch
      %48 = sbr.rel (0) target = $region29
    $region28: #{model_forward.1} parent=1 // pred_region
      %s50 = ssub.s32 10240, 10240
      %51 = vsyncadd [#allocation5], %s50
      %s52 = sshll.u32 [#allocation6], 4
      %s53 = int_to_ptr.vmem [resolvable:$true] %s52
      %58 = dma.hbm_to_vmem [thread:$0]  %s6, 10240, %s53, [#allocation5], 640, 640, 40
    $region29: #{model_forward.1} parent=1 // pred_fallthru
      _
    // Predicated region
    $region30: #{model_forward.1} parent=1 // pred_check
      _
    $region31: #{model_forward.1} parent=1 // pred_check_branch
      %60 = sbr.rel (0) target = $region33
    $region32: #{model_forward.1} parent=1 // pred_region
      _
    $region33: #{model_forward.1} parent=1 // pred_fallthru
      _
    // Predicated region
    $region34: #{model_forward.1} parent=1 // pred_check
      _
    $region35: #{model_forward.1} parent=1 // pred_check_branch
      %62 = sbr.rel (0) target = $region37
    $region36: #{model_forward.1} parent=1 // pred_region
      %63 = dma.done [#allocation3], 10240
    $region37: #{model_forward.1} parent=1 // pred_fallthru
      _
    // Predicated region
    $region38: #{model_forward.1} parent=1 // pred_check
      _
    $region39: #{model_forward.1} parent=1 // pred_check_branch
      %65 = sbr.rel (0) target = $region41
    $region40: #{model_forward.1} parent=1 // pred_region
      %66 = dma.done [#allocation5], 10240
    $region41: #{model_forward.1} parent=1 // pred_fallthru
      _
    // Predicated region
    $region42: #{model_forward.1} parent=1 // pred_check
      _
    $region43: #{model_forward.1} parent=1 // pred_check_branch
      %68 = sbr.rel (0) target = $region45
    $region44: #{model_forward.1} parent=1 // pred_region
      %69 = dma.done [#allocation5], 10240
    $region45: #{model_forward.1} parent=1 // pred_fallthru
      _
    %v70 = vld [vmem:[%s0] sm:$0xff]
    %v71 = vld [vmem:[%s0 + $0x8] sm:$0xff]
    %v72 = vunpack.c.0.s8 %v70
    %v73 = vunpack.c.1.s8 %v70
    %v74 = vunpack.c.2.s8 %v70
    %v75 = vunpack.c.3.s8 %v70
    %v76 = vunpack.c.0.s8 %v71
    %v77 = vunpack.c.1.s8 %v71
    %v78 = vunpack.c.2.s8 %v71
    %v79 = vunpack.c.3.s8 %v71
    %v80 = vcvt.s32.f32 %v72
    %v81 = vcvt.s32.f32 %v73
    %v82 = vcvt.s32.f32 %v74
    %v83 = vcvt.s32.f32 %v75
    %v84 = vcvt.s32.f32 %v76
    %v85 = vcvt.s32.f32 %v77
    %v86 = vcvt.s32.f32 %v78
    %v87 = vcvt.s32.f32 %v79
    %v88 = vld [vmem:[%s1] sm:$0xff]
    %v89 = vld [vmem:[%s1 + $0x8] sm:$0xff]
    %v90 = vld [vmem:[#allocation2] sm:$0xff]
    %v91 = vld [vmem:[#allocation2 + $0x8] sm:$0xff]
    %v92 = vld [vmem:[#allocation2 + $0x10] sm:$0xff]
    %v93 = vld [vmem:[#allocation2 + $0x18] sm:$0xff]
    %v94 = vld [vmem:[#allocation2 + $0x20] sm:$0xff]
    %v95 = vld [vmem:[#allocation2 + $0x28] sm:$0xff]
    %v96 = vld [vmem:[#allocation2 + $0x30] sm:$0xff]
    %v97 = vld [vmem:[#allocation2 + $0x38] sm:$0xff]
    %v98 = vld [vmem:[#allocation2 + $0x40] sm:$0xff]
    %v99 = vld [vmem:[#allocation2 + $0x48] sm:$0xff]
    %v100 = vld [vmem:[#allocation2 + $0x50] sm:$0xff]
    %v101 = vld [vmem:[#allocation2 + $0x58] sm:$0xff]
    %v102 = vld [vmem:[#allocation2 + $0x60] sm:$0xff]
    %v103 = vld [vmem:[#allocation2 + $0x68] sm:$0xff]
    %v104 = vld [vmem:[#allocation2 + $0x70] sm:$0xff]
    %v105 = vld [vmem:[#allocation2 + $0x78] sm:$0xff]
    %v106 = vld [vmem:[#allocation2 + $0x80] sm:$0xff]
    %v107 = vld [vmem:[#allocation2 + $0x88] sm:$0xff]
    %v108 = vld [vmem:[#allocation2 + $0x90] sm:$0xff]
    %v109 = vld [vmem:[#allocation2 + $0x98] sm:$0xff]
    %v110 = vld [vmem:[#allocation2 + $0xa0] sm:$0xff]
    %v111 = vld [vmem:[#allocation2 + $0xa8] sm:$0xff]
    %v112 = vld [vmem:[#allocation2 + $0xb0] sm:$0xff]
    %v113 = vld [vmem:[#allocation2 + $0xb8] sm:$0xff]
    %v114 = vld [vmem:[#allocation2 + $0xc0] sm:$0xff]
    %v115 = vld [vmem:[#allocation2 + $0xc8] sm:$0xff]
    %v116 = vld [vmem:[#allocation2 + $0xd0] sm:$0xff]
    %v117 = vld [vmem:[#allocation2 + $0xd8] sm:$0xff]
    %v118 = vld [vmem:[#allocation2 + $0xe0] sm:$0xff]
    %v119 = vld [vmem:[#allocation2 + $0xe8] sm:$0xff]
    %v120 = vld [vmem:[#allocation2 + $0xf0] sm:$0xff]
    %v121 = vld [vmem:[#allocation2 + $0xf8] sm:$0xff]
    %v122 = vld [vmem:[#allocation2 + $0x100] sm:$0xff]
    %v123 = vld [vmem:[#allocation2 + $0x108] sm:$0xff]
    %v124 = vld [vmem:[#allocation2 + $0x110] sm:$0xff]
    %v125 = vld [vmem:[#allocation2 + $0x118] sm:$0xff]
    %v126 = vld [vmem:[#allocation2 + $0x120] sm:$0xff]
    %v127 = vld [vmem:[#allocation2 + $0x128] sm:$0xff]
    %v128 = vld [vmem:[#allocation2 + $0x130] sm:$0xff]
    %v129 = vld [vmem:[#allocation2 + $0x138] sm:$0xff]
    %v130 = vld [vmem:[#allocation2 + $0x140] sm:$0xff]
    %v131 = vld [vmem:[#allocation2 + $0x148] sm:$0xff]
    %v132 = vld [vmem:[#allocation2 + $0x150] sm:$0xff]
    %v133 = vld [vmem:[#allocation2 + $0x158] sm:$0xff]
    %v134 = vld [vmem:[#allocation2 + $0x160] sm:$0xff]
    %v135 = vld [vmem:[#allocation2 + $0x168] sm:$0xff]
    %v136 = vld [vmem:[#allocation2 + $0x170] sm:$0xff]
    %v137 = vld [vmem:[#allocation2 + $0x178] sm:$0xff]
    %v138 = vld [vmem:[#allocation2 + $0x180] sm:$0xff]
    %v139 = vld [vmem:[#allocation2 + $0x188] sm:$0xff]
    %v140 = vld [vmem:[#allocation2 + $0x190] sm:$0xff]
    %v141 = vld [vmem:[#allocation2 + $0x198] sm:$0xff]
    %v142 = vld [vmem:[#allocation2 + $0x1a0] sm:$0xff]
    %v143 = vld [vmem:[#allocation2 + $0x1a8] sm:$0xff]
    %v144 = vld [vmem:[#allocation2 + $0x1b0] sm:$0xff]
    %v145 = vld [vmem:[#allocation2 + $0x1b8] sm:$0xff]
    %v146 = vld [vmem:[#allocation2 + $0x1c0] sm:$0xff]
    %v147 = vld [vmem:[#allocation2 + $0x1c8] sm:$0xff]
    %v148 = vld [vmem:[#allocation2 + $0x1d0] sm:$0xff]
    %v149 = vld [vmem:[#allocation2 + $0x1d8] sm:$0xff]
    %v150 = vld [vmem:[#allocation2 + $0x1e0] sm:$0xff]
    %v151 = vld [vmem:[#allocation2 + $0x1e8] sm:$0xff]
    %v152 = vld [vmem:[#allocation2 + $0x1f0] sm:$0xff]
    %v153 = vld [vmem:[#allocation2 + $0x1f8] sm:$0xff]
    %v154 = vld [vmem:[#allocation2 + $0x200] sm:$0xff]
    %v155 = vld [vmem:[#allocation2 + $0x208] sm:$0xff]
    %v156 = vld [vmem:[#allocation2 + $0x210] sm:$0xff]
    %v157 = vld [vmem:[#allocation2 + $0x218] sm:$0xff]
    %v158 = vld [vmem:[#allocation2 + $0x220] sm:$0xff]
    %v159 = vld [vmem:[#allocation2 + $0x228] sm:$0xff]
    %v160 = vld [vmem:[#allocation2 + $0x230] sm:$0xff]
    %v161 = vld [vmem:[#allocation2 + $0x238] sm:$0xff]
    %v162 = vld [vmem:[#allocation2 + $0x240] sm:$0xff]
    %v163 = vld [vmem:[#allocation2 + $0x248] sm:$0xff]
    %v164 = vld [vmem:[#allocation2 + $0x250] sm:$0xff]
    %v165 = vld [vmem:[#allocation2 + $0x258] sm:$0xff]
    %v166 = vld [vmem:[#allocation2 + $0x260] sm:$0xff]
    %v167 = vld [vmem:[#allocation2 + $0x268] sm:$0xff]
    %v168 = vld [vmem:[#allocation2 + $0x270] sm:$0xff]
    %v169 = vld [vmem:[#allocation2 + $0x278] sm:$0xff]
    %v170 = vld [vmem:[%s3] sm:$0x1]
    %171 = vmatprep.subr.mxu0 %v91
    %172 = vmatpush1.msra.mxu0 %v90
    %173 = vmatprep.subr.mxu0 %v96
    %174 = vmatpush1.msra.mxu0 %v95
    %175 = vmatprep.subr.mxu0 %v101
    %176 = vmatpush1.msra.mxu0 %v100
    %177 = vmatprep.subr.mxu0 %v106
    %178 = vmatpush1.msra.mxu0 %v105
    %179 = vmatprep.subr.mxu0 %v111
    %180 = vmatpush1.msra.mxu0 %v110
    %181 = vmatprep.subr.mxu0 %v116
    %182 = vmatpush1.msra.mxu0 %v115
    %183 = vmatprep.subr.mxu0 %v121
    %184 = vmatpush1.msra.mxu0 %v120
    %185 = vmatprep.subr.mxu0 %v126
    %186 = vmatpush1.msra.mxu0 %v125
    %187 = vmatprep.subr.mxu0 %v131
    %188 = vmatpush1.msra.mxu0 %v130
    %189 = vmatprep.subr.mxu0 %v136
    %190 = vmatpush1.msra.mxu0 %v135
    %191 = vmatprep.subr.mxu0 %v141
    %192 = vmatpush1.msra.mxu0 %v140
    %193 = vmatprep.subr.mxu0 %v146
    %194 = vmatpush1.msra.mxu0 %v145
    %195 = vmatprep.subr.mxu0 %v151
    %196 = vmatpush1.msra.mxu0 %v150
    %197 = vmatprep.subr.mxu0 %v156
    %198 = vmatpush1.msra.mxu0 %v155
    %199 = vmatprep.subr.mxu0 %v161
    %200 = vmatpush1.msra.mxu0 %v160
    %201 = vmatprep.subr.mxu0 %v166
    %202 = vmatpush1.msra.mxu0 %v165
    %203 = vmatprep.subr.mxu0 0.0
    %204 = vmatpush1.msra.mxu0 0.0
    %205 = vmatprep.subr.mxu0 0.0
    %206 = vmatpush1.msra.mxu0 0.0
    %207 = vmatprep.subr.mxu0 0.0
    %208 = vmatpush1.msra.mxu0 0.0
    %209 = vmatprep.subr.mxu0 0.0
    %210 = vmatpush1.msra.mxu0 0.0
    %211 = vmatprep.subr.mxu0 0.0
    %212 = vmatpush1.msra.mxu0 0.0
    %213 = vmatprep.subr.mxu0 0.0
    %214 = vmatpush1.msra.mxu0 0.0
    %215 = vmatprep.subr.mxu0 0.0
    %216 = vmatpush1.msra.mxu0 0.0
    %217 = vmatprep.subr.mxu0 0.0
    %218 = vmatpush1.msra.mxu0 0.0
    %219 = vmatprep.subr.mxu0 0.0
    %220 = vmatpush1.msra.mxu0 0.0
    %221 = vmatprep.subr.mxu0 0.0
    %222 = vmatpush1.msra.mxu0 0.0
    %223 = vmatprep.subr.mxu0 0.0
    %224 = vmatpush1.msra.mxu0 0.0
    %225 = vmatprep.subr.mxu0 0.0
    %226 = vmatpush1.msra.mxu0 0.0
    %227 = vmatprep.subr.mxu0 0.0
    %228 = vmatpush1.msra.mxu0 0.0
    %229 = vmatprep.subr.mxu0 0.0
    %230 = vmatpush1.msra.mxu0 0.0
    %231 = vmatprep.subr.mxu0 0.0
    %232 = vmatpush1.msra.mxu0 0.0
    %233 = vmatprep.subr.mxu0 0.0
    %234 = vmatpush1.msra.mxu0 0.0
    %235 = vmatprep.mubr.f32.mxu0 0.0
    %236 = vmatmul.mubr.f32.gmra.mrb[0].mxu0 %v88
    %v237 = vpop.f32.mrb[0].mxu0
    %v238 = vadd.f32 0.0, %v237
    %v239 = vpop.f32.mrb[0].mxu0
    %v240 = vadd.f32 0.0, %v239
    %241 = vmatprep.mubr.f32.mxu0 0.0
    %242 = vmatmul.mubr.f32.gmra.mrb[0].mxu0 %v89
    %v243 = vpop.f32.mrb[0].mxu0
    %v244 = vadd.f32 0.0, %v243
    %v245 = vpop.f32.mrb[0].mxu0
    %v246 = vadd.f32 0.0, %v245
    %247 = vdwg.mxu0
    %248 = vmatprep.subr.mxu0 %v93
    %249 = vmatpush1.msra.mxu0 %v92
    %250 = vmatprep.subr.mxu0 %v98
    %251 = vmatpush1.msra.mxu0 %v97
    %252 = vmatprep.subr.mxu0 %v103
    %253 = vmatpush1.msra.mxu0 %v102
    %254 = vmatprep.subr.mxu0 %v108
    %255 = vmatpush1.msra.mxu0 %v107
    %256 = vmatprep.subr.mxu0 %v113
    %257 = vmatpush1.msra.mxu0 %v112
    %258 = vmatprep.subr.mxu0 %v118
    %259 = vmatpush1.msra.mxu0 %v117
    %260 = vmatprep.subr.mxu0 %v123
    %261 = vmatpush1.msra.mxu0 %v122
    %262 = vmatprep.subr.mxu0 %v128
    %263 = vmatpush1.msra.mxu0 %v127
    %264 = vmatprep.subr.mxu0 %v133
    %265 = vmatpush1.msra.mxu0 %v132
    %266 = vmatprep.subr.mxu0 %v138
    %267 = vmatpush1.msra.mxu0 %v137
    %268 = vmatprep.subr.mxu0 %v143
    %269 = vmatpush1.msra.mxu0 %v142
    %270 = vmatprep.subr.mxu0 %v148
    %271 = vmatpush1.msra.mxu0 %v147
    %272 = vmatprep.subr.mxu0 %v153
    %273 = vmatpush1.msra.mxu0 %v152
    %274 = vmatprep.subr.mxu0 %v158
    %275 = vmatpush1.msra.mxu0 %v157
    %276 = vmatprep.subr.mxu0 %v163
    %277 = vmatpush1.msra.mxu0 %v162
    %278 = vmatprep.subr.mxu0 %v168
    %279 = vmatpush1.msra.mxu0 %v167
    %280 = vmatprep.subr.mxu0 0.0
    %281 = vmatpush1.msra.mxu0 0.0
    %282 = vmatprep.subr.mxu0 0.0
    %283 = vmatpush1.msra.mxu0 0.0
    %284 = vmatprep.subr.mxu0 0.0
    %285 = vmatpush1.msra.mxu0 0.0
    %286 = vmatprep.subr.mxu0 0.0
    %287 = vmatpush1.msra.mxu0 0.0
    %288 = vmatprep.subr.mxu0 0.0
    %289 = vmatpush1.msra.mxu0 0.0
    %290 = vmatprep.subr.mxu0 0.0
    %291 = vmatpush1.msra.mxu0 0.0
    %292 = vmatprep.subr.mxu0 0.0
    %293 = vmatpush1.msra.mxu0 0.0
    %294 = vmatprep.subr.mxu0 0.0
    %295 = vmatpush1.msra.mxu0 0.0
    %296 = vmatprep.subr.mxu0 0.0
    %297 = vmatpush1.msra.mxu0 0.0
    %298 = vmatprep.subr.mxu0 0.0
    %299 = vmatpush1.msra.mxu0 0.0
    %300 = vmatprep.subr.mxu0 0.0
    %301 = vmatpush1.msra.mxu0 0.0
    %302 = vmatprep.subr.mxu0 0.0
    %303 = vmatpush1.msra.mxu0 0.0
    %304 = vmatprep.subr.mxu0 0.0
    %305 = vmatpush1.msra.mxu0 0.0
    %306 = vmatprep.subr.mxu0 0.0
    %307 = vmatpush1.msra.mxu0 0.0
    %308 = vmatprep.subr.mxu0 0.0
    %309 = vmatpush1.msra.mxu0 0.0
    %310 = vmatprep.subr.mxu0 0.0
    %311 = vmatpush1.msra.mxu0 0.0
    %312 = vmatprep.mubr.f32.mxu0 0.0
    %313 = vmatmul.mubr.f32.gmra.mrb[0].mxu0 %v88
    %v314 = vpop.f32.mrb[0].mxu0
    %v315 = vadd.f32 0.0, %v314
    %v316 = vpop.f32.mrb[0].mxu0
    %v317 = vadd.f32 0.0, %v316
    %318 = vmatprep.mubr.f32.mxu0 0.0
    %319 = vmatmul.mubr.f32.gmra.mrb[0].mxu0 %v89
    %v320 = vpop.f32.mrb[0].mxu0
    %v321 = vadd.f32 0.0, %v320
    %v322 = vpop.f32.mrb[0].mxu0
    %v323 = vadd.f32 0.0, %v322
    %324 = vdwg.mxu0
    %325 = vmatprep.subr.mxu0 0.0
    %326 = vmatpush1.msra.mxu0 %v94
    %327 = vmatprep.subr.mxu0 0.0
    %328 = vmatpush1.msra.mxu0 %v99
    %329 = vmatprep.subr.mxu0 0.0
    %330 = vmatpush1.msra.mxu0 %v104
    %331 = vmatprep.subr.mxu0 0.0
    %332 = vmatpush1.msra.mxu0 %v109
    %333 = vmatprep.subr.mxu0 0.0
    %334 = vmatpush1.msra.mxu0 %v114
    %335 = vmatprep.subr.mxu0 0.0
    %336 = vmatpush1.msra.mxu0 %v119
    %337 = vmatprep.subr.mxu0 0.0
    %338 = vmatpush1.msra.mxu0 %v124
    %339 = vmatprep.subr.mxu0 0.0
    %340 = vmatpush1.msra.mxu0 %v129
    %341 = vmatprep.subr.mxu0 0.0
    %342 = vmatpush1.msra.mxu0 %v134
    %343 = vmatprep.subr.mxu0 0.0
    %344 = vmatpush1.msra.mxu0 %v139
    %345 = vmatprep.subr.mxu0 0.0
    %346 = vmatpush1.msra.mxu0 %v144
    %347 = vmatprep.subr.mxu0 0.0
    %348 = vmatpush1.msra.mxu0 %v149
    %349 = vmatprep.subr.mxu0 0.0
    %350 = vmatpush1.msra.mxu0 %v154
    %351 = vmatprep.subr.mxu0 0.0
    %352 = vmatpush1.msra.mxu0 %v159
    %353 = vmatprep.subr.mxu0 0.0
    %354 = vmatpush1.msra.mxu0 %v164
    %355 = vmatprep.subr.mxu0 0.0
    %356 = vmatpush1.msra.mxu0 %v169
    %357 = vmatprep.subr.mxu0 0.0
    %358 = vmatpush1.msra.mxu0 0.0
    %359 = vmatprep.subr.mxu0 0.0
    %360 = vmatpush1.msra.mxu0 0.0
    %361 = vmatprep.subr.mxu0 0.0
    %362 = vmatpush1.msra.mxu0 0.0
    %363 = vmatprep.subr.mxu0 0.0
    %364 = vmatpush1.msra.mxu0 0.0
    %365 = vmatprep.subr.mxu0 0.0
    %366 = vmatpush1.msra.mxu0 0.0
    %367 = vmatprep.subr.mxu0 0.0
    %368 = vmatpush1.msra.mxu0 0.0
    %369 = vmatprep.subr.mxu0 0.0
    %370 = vmatpush1.msra.mxu0 0.0
    %371 = vmatprep.subr.mxu0 0.0
    %372 = vmatpush1.msra.mxu0 0.0
    %373 = vmatprep.subr.mxu0 0.0
    %374 = vmatpush1.msra.mxu0 0.0
    %375 = vmatprep.subr.mxu0 0.0
    %376 = vmatpush1.msra.mxu0 0.0
    %377 = vmatprep.subr.mxu0 0.0
    %378 = vmatpush1.msra.mxu0 0.0
    %379 = vmatprep.subr.mxu0 0.0
    %380 = vmatpush1.msra.mxu0 0.0
    %381 = vmatprep.subr.mxu0 0.0
    %382 = vmatpush1.msra.mxu0 0.0
    %383 = vmatprep.subr.mxu0 0.0
    %384 = vmatpush1.msra.mxu0 0.0
    %385 = vmatprep.subr.mxu0 0.0
    %386 = vmatpush1.msra.mxu0 0.0
    %387 = vmatprep.subr.mxu0 0.0
    %388 = vmatpush1.msra.mxu0 0.0
    %389 = vmatprep.mubr.f32.mxu0 0.0
    %390 = vmatmul.mubr.f32.gmra.mrb[0].mxu0 %v88
    %v391 = vpop.f32.mrb[0].mxu0
    %v392 = vadd.f32 0.0, %v391
    %v393 = vpop.f32.mrb[0].mxu0
    %394 = vmatprep.mubr.f32.mxu0 0.0
    %395 = vmatmul.mubr.f32.gmra.mrb[0].mxu0 %v89
    %v396 = vpop.f32.mrb[0].mxu0
    %v397 = vadd.f32 0.0, %v396
    %v398 = vpop.f32.mrb[0].mxu0
    %399 = vdwg.mxu0
    %vm400 = vcmask 130048
    %v402 = vsel %vm400, %v80, 0
    %v405 = vsel %vm400, %v81, 0
    %407 = vmatprep.subr.mxu0 0.0
    %408 = vmatpush1.msra.mxu0 %v240
    %409 = vmatprep.subr.mxu0 0.0
    %410 = vmatpush1.msra.mxu0 %v246
    %411 = vmatprep.subr.mxu0 0.0
    %412 = vmatpush1.msra.mxu0 0.0
    %413 = vmatprep.subr.mxu0 0.0
    %414 = vmatpush1.msra.mxu0 0.0
    %415 = vmatprep.subr.mxu0 0.0
    %416 = vmatpush1.msra.mxu0 0.0
    %417 = vmatprep.subr.mxu0 0.0
    %418 = vmatpush1.msra.mxu0 0.0
    %419 = vmatprep.subr.mxu0 0.0
    %420 = vmatpush1.msra.mxu0 0.0
    %421 = vmatprep.subr.mxu0 0.0
    %422 = vmatpush1.msra.mxu0 0.0
    %423 = vmatprep.subr.mxu0 0.0
    %424 = vmatpush1.msra.mxu0 0.0
    %425 = vmatprep.subr.mxu0 0.0
    %426 = vmatpush1.msra.mxu0 0.0
    %427 = vmatprep.subr.mxu0 0.0
    %428 = vmatpush1.msra.mxu0 0.0
    %429 = vmatprep.subr.mxu0 0.0
    %430 = vmatpush1.msra.mxu0 0.0
    %431 = vmatprep.subr.mxu0 0.0
    %432 = vmatpush1.msra.mxu0 0.0
    %433 = vmatprep.subr.mxu0 0.0
    %434 = vmatpush1.msra.mxu0 0.0
    %435 = vmatprep.subr.mxu0 0.0
    %436 = vmatpush1.msra.mxu0 0.0
    %437 = vmatprep.subr.mxu0 0.0
    %438 = vmatpush1.msra.mxu0 0.0
    %439 = vmatprep.subr.mxu0 0.0
    %440 = vmatpush1.msra.mxu0 0.0
    %441 = vmatprep.subr.mxu0 0.0
    %442 = vmatpush1.msra.mxu0 0.0
    %443 = vmatprep.subr.mxu0 0.0
    %444 = vmatpush1.msra.mxu0 0.0
    %445 = vmatprep.subr.mxu0 0.0
    %446 = vmatpush1.msra.mxu0 0.0
    %447 = vmatprep.subr.mxu0 0.0
    %448 = vmatpush1.msra.mxu0 0.0
    %449 = vmatprep.subr.mxu0 0.0
    %450 = vmatpush1.msra.mxu0 0.0
    %451 = vmatprep.subr.mxu0 0.0
    %452 = vmatpush1.msra.mxu0 0.0
    %453 = vmatprep.subr.mxu0 0.0
    %454 = vmatpush1.msra.mxu0 0.0
    %455 = vmatprep.subr.mxu0 0.0
    %456 = vmatpush1.msra.mxu0 0.0
    %457 = vmatprep.subr.mxu0 0.0
    %458 = vmatpush1.msra.mxu0 0.0
    %459 = vmatprep.subr.mxu0 0.0
    %460 = vmatpush1.msra.mxu0 0.0
    %461 = vmatprep.subr.mxu0 0.0
    %462 = vmatpush1.msra.mxu0 0.0
    %463 = vmatprep.subr.mxu0 0.0
    %464 = vmatpush1.msra.mxu0 0.0
    %465 = vmatprep.subr.mxu0 0.0
    %466 = vmatpush1.msra.mxu0 0.0
    %467 = vmatprep.subr.mxu0 0.0
    %468 = vmatpush1.msra.mxu0 0.0
    %469 = vmatprep.subr.mxu0 0.0
    %470 = vmatpush1.msra.mxu0 0.0
    %471 = vmatprep.mubr.f32.mxu0 0.0
    %472 = vmatmul.mubr.f32.gmra.mrb[0].mxu0 %v402
    %v473 = vpop.f32.mrb[0].mxu0
    %v474 = vadd.f32 0.0, %v473
    %v475 = vpop.f32.mrb[0].mxu0
    %476 = vmatprep.mubr.f32.mxu0 0.0
    %477 = vmatmul.mubr.f32.gmra.mrb[0].mxu0 %v405
    %v478 = vpop.f32.mrb[0].mxu0
    %v479 = vadd.f32 0.0, %v478
    %v480 = vpop.f32.mrb[0].mxu0
    %481 = vdwg.mxu0
    %v482 = vadd.f32 %v238, %v474
    %v483 = vadd.f32 %v244, %v479
    %v485 = vsel %vm400, %v82, 0
    %v488 = vsel %vm400, %v83, 0
    %490 = vmatprep.subr.mxu0 0.0
    %491 = vmatpush1.msra.mxu0 %v315
    %492 = vmatprep.subr.mxu0 0.0
    %493 = vmatpush1.msra.mxu0 %v321
    %494 = vmatprep.subr.mxu0 0.0
    %495 = vmatpush1.msra.mxu0 0.0
    %496 = vmatprep.subr.mxu0 0.0
    %497 = vmatpush1.msra.mxu0 0.0
    %498 = vmatprep.subr.mxu0 0.0
    %499 = vmatpush1.msra.mxu0 0.0
    %500 = vmatprep.subr.mxu0 0.0
    %501 = vmatpush1.msra.mxu0 0.0
    %502 = vmatprep.subr.mxu0 0.0
    %503 = vmatpush1.msra.mxu0 0.0
    %504 = vmatprep.subr.mxu0 0.0
    %505 = vmatpush1.msra.mxu0 0.0
    %506 = vmatprep.subr.mxu0 0.0
    %507 = vmatpush1.msra.mxu0 0.0
    %508 = vmatprep.subr.mxu0 0.0
    %509 = vmatpush1.msra.mxu0 0.0
    %510 = vmatprep.subr.mxu0 0.0
    %511 = vmatpush1.msra.mxu0 0.0
    %512 = vmatprep.subr.mxu0 0.0
    %513 = vmatpush1.msra.mxu0 0.0
    %514 = vmatprep.subr.mxu0 0.0
    %515 = vmatpush1.msra.mxu0 0.0
    %516 = vmatprep.subr.mxu0 0.0
    %517 = vmatpush1.msra.mxu0 0.0
    %518 = vmatprep.subr.mxu0 0.0
    %519 = vmatpush1.msra.mxu0 0.0
    %520 = vmatprep.subr.mxu0 0.0
    %521 = vmatpush1.msra.mxu0 0.0
    %522 = vmatprep.subr.mxu0 0.0
    %523 = vmatpush1.msra.mxu0 0.0
    %524 = vmatprep.subr.mxu0 0.0
    %525 = vmatpush1.msra.mxu0 0.0
    %526 = vmatprep.subr.mxu0 0.0
    %527 = vmatpush1.msra.mxu0 0.0
    %528 = vmatprep.subr.mxu0 0.0
    %529 = vmatpush1.msra.mxu0 0.0
    %530 = vmatprep.subr.mxu0 0.0
    %531 = vmatpush1.msra.mxu0 0.0
    %532 = vmatprep.subr.mxu0 0.0
    %533 = vmatpush1.msra.mxu0 0.0
    %534 = vmatprep.subr.mxu0 0.0
    %535 = vmatpush1.msra.mxu0 0.0
    %536 = vmatprep.subr.mxu0 0.0
    %537 = vmatpush1.msra.mxu0 0.0
    %538 = vmatprep.subr.mxu0 0.0
    %539 = vmatpush1.msra.mxu0 0.0
    %540 = vmatprep.subr.mxu0 0.0
    %541 = vmatpush1.msra.mxu0 0.0
    %542 = vmatprep.subr.mxu0 0.0
    %543 = vmatpush1.msra.mxu0 0.0
    %544 = vmatprep.subr.mxu0 0.0
    %545 = vmatpush1.msra.mxu0 0.0
    %546 = vmatprep.subr.mxu0 0.0
    %547 = vmatpush1.msra.mxu0 0.0
    %548 = vmatprep.subr.mxu0 0.0
    %549 = vmatpush1.msra.mxu0 0.0
    %550 = vmatprep.subr.mxu0 0.0
    %551 = vmatpush1.msra.mxu0 0.0
    %552 = vmatprep.subr.mxu0 0.0
    %553 = vmatpush1.msra.mxu0 0.0
    %554 = vmatprep.mubr.f32.mxu0 0.0
    %555 = vmatmul.mubr.f32.gmra.mrb[0].mxu0 %v485
    %v556 = vpop.f32.mrb[0].mxu0
    %v557 = vadd.f32 0.0, %v556
    %v558 = vpop.f32.mrb[0].mxu0
    %559 = vmatprep.mubr.f32.mxu0 0.0
    %560 = vmatmul.mubr.f32.gmra.mrb[0].mxu0 %v488
    %v561 = vpop.f32.mrb[0].mxu0
    %v562 = vadd.f32 0.0, %v561
    %v563 = vpop.f32.mrb[0].mxu0
    %564 = vdwg.mxu0
    %v565 = vadd.f32 %v482, %v557
    %v566 = vadd.f32 %v483, %v562
    %v568 = vsel %vm400, %v84, 0
    %v571 = vsel %vm400, %v85, 0
    %573 = vmatprep.subr.mxu0 0.0
    %574 = vmatpush1.msra.mxu0 %v317
    %575 = vmatprep.subr.mxu0 0.0
    %576 = vmatpush1.msra.mxu0 %v323
    %577 = vmatprep.subr.mxu0 0.0
    %578 = vmatpush1.msra.mxu0 0.0
    %579 = vmatprep.subr.mxu0 0.0
    %580 = vmatpush1.msra.mxu0 0.0
    %581 = vmatprep.subr.mxu0 0.0
    %582 = vmatpush1.msra.mxu0 0.0
    %583 = vmatprep.subr.mxu0 0.0
    %584 = vmatpush1.msra.mxu0 0.0
    %585 = vmatprep.subr.mxu0 0.0
    %586 = vmatpush1.msra.mxu0 0.0
    %587 = vmatprep.subr.mxu0 0.0
    %588 = vmatpush1.msra.mxu0 0.0
    %589 = vmatprep.subr.mxu0 0.0
    %590 = vmatpush1.msra.mxu0 0.0
    %591 = vmatprep.subr.mxu0 0.0
    %592 = vmatpush1.msra.mxu0 0.0
    %593 = vmatprep.subr.mxu0 0.0
    %594 = vmatpush1.msra.mxu0 0.0
    %595 = vmatprep.subr.mxu0 0.0
    %596 = vmatpush1.msra.mxu0 0.0
    %597 = vmatprep.subr.mxu0 0.0
    %598 = vmatpush1.msra.mxu0 0.0
    %599 = vmatprep.subr.mxu0 0.0
    %600 = vmatpush1.msra.mxu0 0.0
    %601 = vmatprep.subr.mxu0 0.0
    %602 = vmatpush1.msra.mxu0 0.0
    %603 = vmatprep.subr.mxu0 0.0
    %604 = vmatpush1.msra.mxu0 0.0
    %605 = vmatprep.subr.mxu0 0.0
    %606 = vmatpush1.msra.mxu0 0.0
    %607 = vmatprep.subr.mxu0 0.0
    %608 = vmatpush1.msra.mxu0 0.0
    %609 = vmatprep.subr.mxu0 0.0
    %610 = vmatpush1.msra.mxu0 0.0
    %611 = vmatprep.subr.mxu0 0.0
    %612 = vmatpush1.msra.mxu0 0.0
    %613 = vmatprep.subr.mxu0 0.0
    %614 = vmatpush1.msra.mxu0 0.0
    %615 = vmatprep.subr.mxu0 0.0
    %616 = vmatpush1.msra.mxu0 0.0
    %617 = vmatprep.subr.mxu0 0.0
    %618 = vmatpush1.msra.mxu0 0.0
    %619 = vmatprep.subr.mxu0 0.0
    %620 = vmatpush1.msra.mxu0 0.0
    %621 = vmatprep.subr.mxu0 0.0
    %622 = vmatpush1.msra.mxu0 0.0
    %623 = vmatprep.subr.mxu0 0.0
    %624 = vmatpush1.msra.mxu0 0.0
    %625 = vmatprep.subr.mxu0 0.0
    %626 = vmatpush1.msra.mxu0 0.0
    %627 = vmatprep.subr.mxu0 0.0
    %628 = vmatpush1.msra.mxu0 0.0
    %629 = vmatprep.subr.mxu0 0.0
    %630 = vmatpush1.msra.mxu0 0.0
    %631 = vmatprep.subr.mxu0 0.0
    %632 = vmatpush1.msra.mxu0 0.0
    %633 = vmatprep.subr.mxu0 0.0
    %634 = vmatpush1.msra.mxu0 0.0
    %635 = vmatprep.subr.mxu0 0.0
    %636 = vmatpush1.msra.mxu0 0.0
    %637 = vmatprep.mubr.f32.mxu0 0.0
    %638 = vmatmul.mubr.f32.gmra.mrb[0].mxu0 %v568
    %v639 = vpop.f32.mrb[0].mxu0
    %v640 = vadd.f32 0.0, %v639
    %v641 = vpop.f32.mrb[0].mxu0
    %642 = vmatprep.mubr.f32.mxu0 0.0
    %643 = vmatmul.mubr.f32.gmra.mrb[0].mxu0 %v571
    %v644 = vpop.f32.mrb[0].mxu0
    %v645 = vadd.f32 0.0, %v644
    %v646 = vpop.f32.mrb[0].mxu0
    %647 = vdwg.mxu0
    %v648 = vadd.f32 %v565, %v640
    %v649 = vadd.f32 %v566, %v645
    %v651 = vsel %vm400, %v86, 0
    %v654 = vsel %vm400, %v87, 0
    %656 = vmatprep.subr.mxu0 0.0
    %657 = vmatpush1.msra.mxu0 %v392
    %658 = vmatprep.subr.mxu0 0.0
    %659 = vmatpush1.msra.mxu0 %v397
    %660 = vmatprep.subr.mxu0 0.0
    %661 = vmatpush1.msra.mxu0 0.0
    %662 = vmatprep.subr.mxu0 0.0
    %663 = vmatpush1.msra.mxu0 0.0
    %664 = vmatprep.subr.mxu0 0.0
    %665 = vmatpush1.msra.mxu0 0.0
    %666 = vmatprep.subr.mxu0 0.0
    %667 = vmatpush1.msra.mxu0 0.0
    %668 = vmatprep.subr.mxu0 0.0
    %669 = vmatpush1.msra.mxu0 0.0
    %670 = vmatprep.subr.mxu0 0.0
    %671 = vmatpush1.msra.mxu0 0.0
    %672 = vmatprep.subr.mxu0 0.0
    %673 = vmatpush1.msra.mxu0 0.0
    %674 = vmatprep.subr.mxu0 0.0
    %675 = vmatpush1.msra.mxu0 0.0
    %676 = vmatprep.subr.mxu0 0.0
    %677 = vmatpush1.msra.mxu0 0.0
    %678 = vmatprep.subr.mxu0 0.0
    %679 = vmatpush1.msra.mxu0 0.0
    %680 = vmatprep.subr.mxu0 0.0
    %681 = vmatpush1.msra.mxu0 0.0
    %682 = vmatprep.subr.mxu0 0.0
    %683 = vmatpush1.msra.mxu0 0.0
    %684 = vmatprep.subr.mxu0 0.0
    %685 = vmatpush1.msra.mxu0 0.0
    %686 = vmatprep.subr.mxu0 0.0
    %687 = vmatpush1.msra.mxu0 0.0
    %688 = vmatprep.subr.mxu0 0.0
    %689 = vmatpush1.msra.mxu0 0.0
    %690 = vmatprep.subr.mxu0 0.0
    %691 = vmatpush1.msra.mxu0 0.0
    %692 = vmatprep.subr.mxu0 0.0
    %693 = vmatpush1.msra.mxu0 0.0
    %694 = vmatprep.subr.mxu0 0.0
    %695 = vmatpush1.msra.mxu0 0.0
    %696 = vmatprep.subr.mxu0 0.0
    %697 = vmatpush1.msra.mxu0 0.0
    %698 = vmatprep.subr.mxu0 0.0
    %699 = vmatpush1.msra.mxu0 0.0
    %700 = vmatprep.subr.mxu0 0.0
    %701 = vmatpush1.msra.mxu0 0.0
    %702 = vmatprep.subr.mxu0 0.0
    %703 = vmatpush1.msra.mxu0 0.0
    %704 = vmatprep.subr.mxu0 0.0
    %705 = vmatpush1.msra.mxu0 0.0
    %706 = vmatprep.subr.mxu0 0.0
    %707 = vmatpush1.msra.mxu0 0.0
    %708 = vmatprep.subr.mxu0 0.0
    %709 = vmatpush1.msra.mxu0 0.0
    %710 = vmatprep.subr.mxu0 0.0
    %711 = vmatpush1.msra.mxu0 0.0
    %712 = vmatprep.subr.mxu0 0.0
    %713 = vmatpush1.msra.mxu0 0.0
    %714 = vmatprep.subr.mxu0 0.0
    %715 = vmatpush1.msra.mxu0 0.0
    %716 = vmatprep.subr.mxu0 0.0
    %717 = vmatpush1.msra.mxu0 0.0
    %718 = vmatprep.subr.mxu0 0.0
    %719 = vmatpush1.msra.mxu0 0.0
    %720 = vmatprep.mubr.f32.mxu0 0.0
    %721 = vmatmul.mubr.f32.gmra.mrb[0].mxu0 %v651
    %v722 = vpop.f32.mrb[0].mxu0
    %v723 = vadd.f32 0.0, %v722
    %v724 = vpop.f32.mrb[0].mxu0
    %725 = vmatprep.mubr.f32.mxu0 0.0
    %726 = vmatmul.mubr.f32.gmra.mrb[0].mxu0 %v654
    %v727 = vpop.f32.mrb[0].mxu0
    %v728 = vadd.f32 0.0, %v727
    %v729 = vpop.f32.mrb[0].mxu0
    %730 = vdwg.mxu0
    %v731 = vadd.f32 %v648, %v723
    %v732 = vadd.f32 %v649, %v728
    %v734 = vlaneseq
    %v735 = vshrl.u32 %v734, 7
    %v736 = vsub.s32 0, %v735
    %v737 = vrot.slane %v170, %v736
    %v739 = vadd.f32 %v731, %v737
    %v740 = vadd.f32 %v732, %v737
    %v741 = vmax.f32 %v739, 0.0
    %v742 = vmax.f32 %v740, 0.0
    %v743 = vld [vmem:[#allocation4] sm:$0xff]
    %v744 = vld [vmem:[#allocation4 + $0x8] sm:$0xff]
    %v745 = vld [vmem:[#allocation4 + $0x10] sm:$0xff]
    %v746 = vld [vmem:[#allocation4 + $0x18] sm:$0xff]
    %v747 = vld [vmem:[#allocation4 + $0x20] sm:$0xff]
    %v748 = vld [vmem:[#allocation4 + $0x28] sm:$0xff]
    %v749 = vld [vmem:[#allocation4 + $0x30] sm:$0xff]
    %v750 = vld [vmem:[#allocation4 + $0x38] sm:$0xff]
    %v751 = vld [vmem:[#allocation4 + $0x40] sm:$0xff]
    %v752 = vld [vmem:[#allocation4 + $0x48] sm:$0xff]
    %v753 = vld [vmem:[#allocation4 + $0x50] sm:$0xff]
    %v754 = vld [vmem:[#allocation4 + $0x58] sm:$0xff]
    %v755 = vld [vmem:[#allocation4 + $0x60] sm:$0xff]
    %v756 = vld [vmem:[#allocation4 + $0x68] sm:$0xff]
    %v757 = vld [vmem:[#allocation4 + $0x70] sm:$0xff]
    %v758 = vld [vmem:[#allocation4 + $0x78] sm:$0xff]
    %v759 = vld [vmem:[#allocation4 + $0x80] sm:$0xff]
    %v760 = vld [vmem:[#allocation4 + $0x88] sm:$0xff]
    %v761 = vld [vmem:[#allocation4 + $0x90] sm:$0xff]
    %v762 = vld [vmem:[#allocation4 + $0x98] sm:$0xff]
    %v763 = vld [vmem:[#allocation4 + $0xa0] sm:$0xff]
    %v764 = vld [vmem:[#allocation4 + $0xa8] sm:$0xff]
    %v765 = vld [vmem:[#allocation4 + $0xb0] sm:$0xff]
    %v766 = vld [vmem:[#allocation4 + $0xb8] sm:$0xff]
    %v767 = vld [vmem:[#allocation4 + $0xc0] sm:$0xff]
    %v768 = vld [vmem:[#allocation4 + $0xc8] sm:$0xff]
    %v769 = vld [vmem:[#allocation4 + $0xd0] sm:$0xff]
    %v770 = vld [vmem:[#allocation4 + $0xd8] sm:$0xff]
    %v771 = vld [vmem:[#allocation4 + $0xe0] sm:$0xff]
    %v772 = vld [vmem:[#allocation4 + $0xe8] sm:$0xff]
    %v773 = vld [vmem:[#allocation4 + $0xf0] sm:$0xff]
    %v774 = vld [vmem:[#allocation4 + $0xf8] sm:$0xff]
    %v775 = vld [vmem:[#allocation4 + $0x100] sm:$0xff]
    %v776 = vld [vmem:[#allocation4 + $0x108] sm:$0xff]
    %v777 = vld [vmem:[#allocation4 + $0x110] sm:$0xff]
    %v778 = vld [vmem:[#allocation4 + $0x118] sm:$0xff]
    %v779 = vld [vmem:[#allocation4 + $0x120] sm:$0xff]
    %v780 = vld [vmem:[#allocation4 + $0x128] sm:$0xff]
    %v781 = vld [vmem:[#allocation4 + $0x130] sm:$0xff]
    %v782 = vld [vmem:[#allocation4 + $0x138] sm:$0xff]
    %v783 = vld [vmem:[#allocation4 + $0x140] sm:$0xff]
    %v784 = vld [vmem:[#allocation4 + $0x148] sm:$0xff]
    %v785 = vld [vmem:[#allocation4 + $0x150] sm:$0xff]
    %v786 = vld [vmem:[#allocation4 + $0x158] sm:$0xff]
    %v787 = vld [vmem:[#allocation4 + $0x160] sm:$0xff]
    %v788 = vld [vmem:[#allocation4 + $0x168] sm:$0xff]
    %v789 = vld [vmem:[#allocation4 + $0x170] sm:$0xff]
    %v790 = vld [vmem:[#allocation4 + $0x178] sm:$0xff]
    %v791 = vld [vmem:[#allocation4 + $0x180] sm:$0xff]
    %v792 = vld [vmem:[#allocation4 + $0x188] sm:$0xff]
    %v793 = vld [vmem:[#allocation4 + $0x190] sm:$0xff]
    %v794 = vld [vmem:[#allocation4 + $0x198] sm:$0xff]
    %v795 = vld [vmem:[#allocation4 + $0x1a0] sm:$0xff]
    %v796 = vld [vmem:[#allocation4 + $0x1a8] sm:$0xff]
    %v797 = vld [vmem:[#allocation4 + $0x1b0] sm:$0xff]
    %v798 = vld [vmem:[#allocation4 + $0x1b8] sm:$0xff]
    %v799 = vld [vmem:[#allocation4 + $0x1c0] sm:$0xff]
    %v800 = vld [vmem:[#allocation4 + $0x1c8] sm:$0xff]
    %v801 = vld [vmem:[#allocation4 + $0x1d0] sm:$0xff]
    %v802 = vld [vmem:[#allocation4 + $0x1d8] sm:$0xff]
    %v803 = vld [vmem:[#allocation4 + $0x1e0] sm:$0xff]
    %v804 = vld [vmem:[#allocation4 + $0x1e8] sm:$0xff]
    %v805 = vld [vmem:[#allocation4 + $0x1f0] sm:$0xff]
    %v806 = vld [vmem:[#allocation4 + $0x1f8] sm:$0xff]
    %v807 = vld [vmem:[#allocation4 + $0x200] sm:$0xff]
    %v808 = vld [vmem:[#allocation4 + $0x208] sm:$0xff]
    %v809 = vld [vmem:[#allocation4 + $0x210] sm:$0xff]
    %v810 = vld [vmem:[#allocation4 + $0x218] sm:$0xff]
    %v811 = vld [vmem:[#allocation4 + $0x220] sm:$0xff]
    %v812 = vld [vmem:[#allocation4 + $0x228] sm:$0xff]
    %v813 = vld [vmem:[#allocation4 + $0x230] sm:$0xff]
    %v814 = vld [vmem:[#allocation4 + $0x238] sm:$0xff]
    %v815 = vld [vmem:[#allocation4 + $0x240] sm:$0xff]
    %v816 = vld [vmem:[#allocation4 + $0x248] sm:$0xff]
    %v817 = vld [vmem:[#allocation4 + $0x250] sm:$0xff]
    %v818 = vld [vmem:[#allocation4 + $0x258] sm:$0xff]
    %v819 = vld [vmem:[#allocation4 + $0x260] sm:$0xff]
    %v820 = vld [vmem:[#allocation4 + $0x268] sm:$0xff]
    %v821 = vld [vmem:[#allocation4 + $0x270] sm:$0xff]
    %v822 = vld [vmem:[#allocation4 + $0x278] sm:$0xff]
    %v823 = vld [vmem:[%s5] sm:$0x1]
    %824 = vmatprep.subr.mxu0 %v744
    %825 = vmatpush1.msra.mxu0 %v743
    %826 = vmatprep.subr.mxu0 %v749
    %827 = vmatpush1.msra.mxu0 %v748
    %828 = vmatprep.subr.mxu0 %v754
    %829 = vmatpush1.msra.mxu0 %v753
    %830 = vmatprep.subr.mxu0 %v759
    %831 = vmatpush1.msra.mxu0 %v758
    %832 = vmatprep.subr.mxu0 %v764
    %833 = vmatpush1.msra.mxu0 %v763
    %834 = vmatprep.subr.mxu0 %v769
    %835 = vmatpush1.msra.mxu0 %v768
    %836 = vmatprep.subr.mxu0 %v774
    %837 = vmatpush1.msra.mxu0 %v773
    %838 = vmatprep.subr.mxu0 %v779
    %839 = vmatpush1.msra.mxu0 %v778
    %840 = vmatprep.subr.mxu0 %v784
    %841 = vmatpush1.msra.mxu0 %v783
    %842 = vmatprep.subr.mxu0 %v789
    %843 = vmatpush1.msra.mxu0 %v788
    %844 = vmatprep.subr.mxu0 %v794
    %845 = vmatpush1.msra.mxu0 %v793
    %846 = vmatprep.subr.mxu0 %v799
    %847 = vmatpush1.msra.mxu0 %v798
    %848 = vmatprep.subr.mxu0 %v804
    %849 = vmatpush1.msra.mxu0 %v803
    %850 = vmatprep.subr.mxu0 %v809
    %851 = vmatpush1.msra.mxu0 %v808
    %852 = vmatprep.subr.mxu0 %v814
    %853 = vmatpush1.msra.mxu0 %v813
    %854 = vmatprep.subr.mxu0 %v819
    %855 = vmatpush1.msra.mxu0 %v818
    %856 = vmatprep.subr.mxu0 0.0
    %857 = vmatpush1.msra.mxu0 0.0
    %858 = vmatprep.subr.mxu0 0.0
    %859 = vmatpush1.msra.mxu0 0.0
    %860 = vmatprep.subr.mxu0 0.0
    %861 = vmatpush1.msra.mxu0 0.0
    %862 = vmatprep.subr.mxu0 0.0
    %863 = vmatpush1.msra.mxu0 0.0
    %864 = vmatprep.subr.mxu0 0.0
    %865 = vmatpush1.msra.mxu0 0.0
    %866 = vmatprep.subr.mxu0 0.0
    %867 = vmatpush1.msra.mxu0 0.0
    %868 = vmatprep.subr.mxu0 0.0
    %869 = vmatpush1.msra.mxu0 0.0
    %870 = vmatprep.subr.mxu0 0.0
    %871 = vmatpush1.msra.mxu0 0.0
    %872 = vmatprep.subr.mxu0 0.0
    %873 = vmatpush1.msra.mxu0 0.0
    %874 = vmatprep.subr.mxu0 0.0
    %875 = vmatpush1.msra.mxu0 0.0
    %876 = vmatprep.subr.mxu0 0.0
    %877 = vmatpush1.msra.mxu0 0.0
    %878 = vmatprep.subr.mxu0 0.0
    %879 = vmatpush1.msra.mxu0 0.0
    %880 = vmatprep.subr.mxu0 0.0
    %881 = vmatpush1.msra.mxu0 0.0
    %882 = vmatprep.subr.mxu0 0.0
    %883 = vmatpush1.msra.mxu0 0.0
    %884 = vmatprep.subr.mxu0 0.0
    %885 = vmatpush1.msra.mxu0 0.0
    %886 = vmatprep.subr.mxu0 0.0
    %887 = vmatpush1.msra.mxu0 0.0
    %888 = vmatprep.mubr.f32.mxu0 0.0
    %889 = vmatmul.mubr.f32.gmra.mrb[0].mxu0 %v741
    %v890 = vpop.f32.mrb[0].mxu0
    %v891 = vadd.f32 0.0, %v890
    %v892 = vpop.f32.mrb[0].mxu0
    %v893 = vadd.f32 0.0, %v892
    %894 = vmatprep.mubr.f32.mxu0 0.0
    %895 = vmatmul.mubr.f32.gmra.mrb[0].mxu0 %v742
    %v896 = vpop.f32.mrb[0].mxu0
    %v897 = vadd.f32 0.0, %v896
    %v898 = vpop.f32.mrb[0].mxu0
    %v899 = vadd.f32 0.0, %v898
    %900 = vdwg.mxu0
    %901 = vmatprep.subr.mxu0 %v746
    %902 = vmatpush1.msra.mxu0 %v745
    %903 = vmatprep.subr.mxu0 %v751
    %904 = vmatpush1.msra.mxu0 %v750
    %905 = vmatprep.subr.mxu0 %v756
    %906 = vmatpush1.msra.mxu0 %v755
    %907 = vmatprep.subr.mxu0 %v761
    %908 = vmatpush1.msra.mxu0 %v760
    %909 = vmatprep.subr.mxu0 %v766
    %910 = vmatpush1.msra.mxu0 %v765
    %911 = vmatprep.subr.mxu0 %v771
    %912 = vmatpush1.msra.mxu0 %v770
    %913 = vmatprep.subr.mxu0 %v776
    %914 = vmatpush1.msra.mxu0 %v775
    %915 = vmatprep.subr.mxu0 %v781
    %916 = vmatpush1.msra.mxu0 %v780
    %917 = vmatprep.subr.mxu0 %v786
    %918 = vmatpush1.msra.mxu0 %v785
    %919 = vmatprep.subr.mxu0 %v791
    %920 = vmatpush1.msra.mxu0 %v790
    %921 = vmatprep.subr.mxu0 %v796
    %922 = vmatpush1.msra.mxu0 %v795
    %923 = vmatprep.subr.mxu0 %v801
    %924 = vmatpush1.msra.mxu0 %v800
    %925 = vmatprep.subr.mxu0 %v806
    %926 = vmatpush1.msra.mxu0 %v805
    %927 = vmatprep.subr.mxu0 %v811
    %928 = vmatpush1.msra.mxu0 %v810
    %929 = vmatprep.subr.mxu0 %v816
    %930 = vmatpush1.msra.mxu0 %v815
    %931 = vmatprep.subr.mxu0 %v821
    %932 = vmatpush1.msra.mxu0 %v820
    %933 = vmatprep.subr.mxu0 0.0
    %934 = vmatpush1.msra.mxu0 0.0
    %935 = vmatprep.subr.mxu0 0.0
    %936 = vmatpush1.msra.mxu0 0.0
    %937 = vmatprep.subr.mxu0 0.0
    %938 = vmatpush1.msra.mxu0 0.0
    %939 = vmatprep.subr.mxu0 0.0
    %940 = vmatpush1.msra.mxu0 0.0
    %941 = vmatprep.subr.mxu0 0.0
    %942 = vmatpush1.msra.mxu0 0.0
    %943 = vmatprep.subr.mxu0 0.0
    %944 = vmatpush1.msra.mxu0 0.0
    %945 = vmatprep.subr.mxu0 0.0
    %946 = vmatpush1.msra.mxu0 0.0
    %947 = vmatprep.subr.mxu0 0.0
    %948 = vmatpush1.msra.mxu0 0.0
    %949 = vmatprep.subr.mxu0 0.0
    %950 = vmatpush1.msra.mxu0 0.0
    %951 = vmatprep.subr.mxu0 0.0
    %952 = vmatpush1.msra.mxu0 0.0
    %953 = vmatprep.subr.mxu0 0.0
    %954 = vmatpush1.msra.mxu0 0.0
    %955 = vmatprep.subr.mxu0 0.0
    %956 = vmatpush1.msra.mxu0 0.0
    %957 = vmatprep.subr.mxu0 0.0
    %958 = vmatpush1.msra.mxu0 0.0
    %959 = vmatprep.subr.mxu0 0.0
    %960 = vmatpush1.msra.mxu0 0.0
    %961 = vmatprep.subr.mxu0 0.0
    %962 = vmatpush1.msra.mxu0 0.0
    %963 = vmatprep.subr.mxu0 0.0
    %964 = vmatpush1.msra.mxu0 0.0
    %965 = vmatprep.mubr.f32.mxu0 0.0
    %966 = vmatmul.mubr.f32.gmra.mrb[0].mxu0 %v741
    %v967 = vpop.f32.mrb[0].mxu0
    %v968 = vadd.f32 0.0, %v967
    %v969 = vpop.f32.mrb[0].mxu0
    %v970 = vadd.f32 0.0, %v969
    %971 = vmatprep.mubr.f32.mxu0 0.0
    %972 = vmatmul.mubr.f32.gmra.mrb[0].mxu0 %v742
    %v973 = vpop.f32.mrb[0].mxu0
    %v974 = vadd.f32 0.0, %v973
    %v975 = vpop.f32.mrb[0].mxu0
    %v976 = vadd.f32 0.0, %v975
    %977 = vdwg.mxu0
    %978 = vmatprep.subr.mxu0 0.0
    %979 = vmatpush1.msra.mxu0 %v747
    %980 = vmatprep.subr.mxu0 0.0
    %981 = vmatpush1.msra.mxu0 %v752
    %982 = vmatprep.subr.mxu0 0.0
    %983 = vmatpush1.msra.mxu0 %v757
    %984 = vmatprep.subr.mxu0 0.0
    %985 = vmatpush1.msra.mxu0 %v762
    %986 = vmatprep.subr.mxu0 0.0
    %987 = vmatpush1.msra.mxu0 %v767
    %988 = vmatprep.subr.mxu0 0.0
    %989 = vmatpush1.msra.mxu0 %v772
    %990 = vmatprep.subr.mxu0 0.0
    %991 = vmatpush1.msra.mxu0 %v777
    %992 = vmatprep.subr.mxu0 0.0
    %993 = vmatpush1.msra.mxu0 %v782
    %994 = vmatprep.subr.mxu0 0.0
    %995 = vmatpush1.msra.mxu0 %v787
    %996 = vmatprep.subr.mxu0 0.0
    %997 = vmatpush1.msra.mxu0 %v792
    %998 = vmatprep.subr.mxu0 0.0
    %999 = vmatpush1.msra.mxu0 %v797
    %1000 = vmatprep.subr.mxu0 0.0
    %1001 = vmatpush1.msra.mxu0 %v802
    %1002 = vmatprep.subr.mxu0 0.0
    %1003 = vmatpush1.msra.mxu0 %v807
    %1004 = vmatprep.subr.mxu0 0.0
    %1005 = vmatpush1.msra.mxu0 %v812
    %1006 = vmatprep.subr.mxu0 0.0
    %1007 = vmatpush1.msra.mxu0 %v817
    %1008 = vmatprep.subr.mxu0 0.0
    %1009 = vmatpush1.msra.mxu0 %v822
    %1010 = vmatprep.subr.mxu0 0.0
    %1011 = vmatpush1.msra.mxu0 0.0
    %1012 = vmatprep.subr.mxu0 0.0
    %1013 = vmatpush1.msra.mxu0 0.0
    %1014 = vmatprep.subr.mxu0 0.0
    %1015 = vmatpush1.msra.mxu0 0.0
    %1016 = vmatprep.subr.mxu0 0.0
    %1017 = vmatpush1.msra.mxu0 0.0
    %1018 = vmatprep.subr.mxu0 0.0
    %1019 = vmatpush1.msra.mxu0 0.0
    %1020 = vmatprep.subr.mxu0 0.0
    %1021 = vmatpush1.msra.mxu0 0.0
    %1022 = vmatprep.subr.mxu0 0.0
    %1023 = vmatpush1.msra.mxu0 0.0
    %1024 = vmatprep.subr.mxu0 0.0
    %1025 = vmatpush1.msra.mxu0 0.0
    %1026 = vmatprep.subr.mxu0 0.0
    %1027 = vmatpush1.msra.mxu0 0.0
    %1028 = vmatprep.subr.mxu0 0.0
    %1029 = vmatpush1.msra.mxu0 0.0
    %1030 = vmatprep.subr.mxu0 0.0
    %1031 = vmatpush1.msra.mxu0 0.0
    %1032 = vmatprep.subr.mxu0 0.0
    %1033 = vmatpush1.msra.mxu0 0.0
    %1034 = vmatprep.subr.mxu0 0.0
    %1035 = vmatpush1.msra.mxu0 0.0
    %1036 = vmatprep.subr.mxu0 0.0
    %1037 = vmatpush1.msra.mxu0 0.0
    %1038 = vmatprep.subr.mxu0 0.0
    %1039 = vmatpush1.msra.mxu0 0.0
    %1040 = vmatprep.subr.mxu0 0.0
    %1041 = vmatpush1.msra.mxu0 0.0
    %1042 = vmatprep.mubr.f32.mxu0 0.0
    %1043 = vmatmul.mubr.f32.gmra.mrb[0].mxu0 %v741
    %v1044 = vpop.f32.mrb[0].mxu0
    %v1045 = vadd.f32 0.0, %v1044
    %v1046 = vpop.f32.mrb[0].mxu0
    %1047 = vmatprep.mubr.f32.mxu0 0.0
    %1048 = vmatmul.mubr.f32.gmra.mrb[0].mxu0 %v742
    %v1049 = vpop.f32.mrb[0].mxu0
    %v1050 = vadd.f32 0.0, %v1049
    %v1051 = vpop.f32.mrb[0].mxu0
    %1052 = vdwg.mxu0
    %1053 = vmatprep.subr.mxu0 0.0
    %1054 = vmatpush1.msra.mxu0 %v893
    %1055 = vmatprep.subr.mxu0 0.0
    %1056 = vmatpush1.msra.mxu0 %v899
    %1057 = vmatprep.subr.mxu0 0.0
    %1058 = vmatpush1.msra.mxu0 0.0
    %1059 = vmatprep.subr.mxu0 0.0
    %1060 = vmatpush1.msra.mxu0 0.0
    %1061 = vmatprep.subr.mxu0 0.0
    %1062 = vmatpush1.msra.mxu0 0.0
    %1063 = vmatprep.subr.mxu0 0.0
    %1064 = vmatpush1.msra.mxu0 0.0
    %1065 = vmatprep.subr.mxu0 0.0
    %1066 = vmatpush1.msra.mxu0 0.0
    %1067 = vmatprep.subr.mxu0 0.0
    %1068 = vmatpush1.msra.mxu0 0.0
    %1069 = vmatprep.subr.mxu0 0.0
    %1070 = vmatpush1.msra.mxu0 0.0
    %1071 = vmatprep.subr.mxu0 0.0
    %1072 = vmatpush1.msra.mxu0 0.0
    %1073 = vmatprep.subr.mxu0 0.0
    %1074 = vmatpush1.msra.mxu0 0.0
    %1075 = vmatprep.subr.mxu0 0.0
    %1076 = vmatpush1.msra.mxu0 0.0
    %1077 = vmatprep.subr.mxu0 0.0
    %1078 = vmatpush1.msra.mxu0 0.0
    %1079 = vmatprep.subr.mxu0 0.0
    %1080 = vmatpush1.msra.mxu0 0.0
    %1081 = vmatprep.subr.mxu0 0.0
    %1082 = vmatpush1.msra.mxu0 0.0
    %1083 = vmatprep.subr.mxu0 0.0
    %1084 = vmatpush1.msra.mxu0 0.0
    %1085 = vmatprep.subr.mxu0 0.0
    %1086 = vmatpush1.msra.mxu0 0.0
    %1087 = vmatprep.subr.mxu0 0.0
    %1088 = vmatpush1.msra.mxu0 0.0
    %1089 = vmatprep.subr.mxu0 0.0
    %1090 = vmatpush1.msra.mxu0 0.0
    %1091 = vmatprep.subr.mxu0 0.0
    %1092 = vmatpush1.msra.mxu0 0.0
    %1093 = vmatprep.subr.mxu0 0.0
    %1094 = vmatpush1.msra.mxu0 0.0
    %1095 = vmatprep.subr.mxu0 0.0
    %1096 = vmatpush1.msra.mxu0 0.0
    %1097 = vmatprep.subr.mxu0 0.0
    %1098 = vmatpush1.msra.mxu0 0.0
    %1099 = vmatprep.subr.mxu0 0.0
    %1100 = vmatpush1.msra.mxu0 0.0
    %1101 = vmatprep.subr.mxu0 0.0
    %1102 = vmatpush1.msra.mxu0 0.0
    %1103 = vmatprep.subr.mxu0 0.0
    %1104 = vmatpush1.msra.mxu0 0.0
    %1105 = vmatprep.subr.mxu0 0.0
    %1106 = vmatpush1.msra.mxu0 0.0
    %1107 = vmatprep.subr.mxu0 0.0
    %1108 = vmatpush1.msra.mxu0 0.0
    %1109 = vmatprep.subr.mxu0 0.0
    %1110 = vmatpush1.msra.mxu0 0.0
    %1111 = vmatprep.subr.mxu0 0.0
    %1112 = vmatpush1.msra.mxu0 0.0
    %1113 = vmatprep.subr.mxu0 0.0
    %1114 = vmatpush1.msra.mxu0 0.0
    %1115 = vmatprep.subr.mxu0 0.0
    %1116 = vmatpush1.msra.mxu0 0.0
    %1117 = vmatprep.mubr.f32.mxu0 0.0
    %1118 = vmatmul.mubr.f32.gmra.mrb[0].mxu0 %v402
    %v1119 = vpop.f32.mrb[0].mxu0
    %v1120 = vadd.f32 0.0, %v1119
    %v1121 = vpop.f32.mrb[0].mxu0
    %1122 = vmatprep.mubr.f32.mxu0 0.0
    %1123 = vmatmul.mubr.f32.gmra.mrb[0].mxu0 %v405
    %v1124 = vpop.f32.mrb[0].mxu0
    %v1125 = vadd.f32 0.0, %v1124
    %v1126 = vpop.f32.mrb[0].mxu0
    %1127 = vdwg.mxu0
    %v1128 = vadd.f32 %v891, %v1120
    %v1129 = vadd.f32 %v897, %v1125
    %1130 = vmatprep.subr.mxu0 0.0
    %1131 = vmatpush1.msra.mxu0 %v968
    %1132 = vmatprep.subr.mxu0 0.0
    %1133 = vmatpush1.msra.mxu0 %v974
    %1134 = vmatprep.subr.mxu0 0.0
    %1135 = vmatpush1.msra.mxu0 0.0
    %1136 = vmatprep.subr.mxu0 0.0
    %1137 = vmatpush1.msra.mxu0 0.0
    %1138 = vmatprep.subr.mxu0 0.0
    %1139 = vmatpush1.msra.mxu0 0.0
    %1140 = vmatprep.subr.mxu0 0.0
    %1141 = vmatpush1.msra.mxu0 0.0
    %1142 = vmatprep.subr.mxu0 0.0
    %1143 = vmatpush1.msra.mxu0 0.0
    %1144 = vmatprep.subr.mxu0 0.0
    %1145 = vmatpush1.msra.mxu0 0.0
    %1146 = vmatprep.subr.mxu0 0.0
    %1147 = vmatpush1.msra.mxu0 0.0
    %1148 = vmatprep.subr.mxu0 0.0
    %1149 = vmatpush1.msra.mxu0 0.0
    %1150 = vmatprep.subr.mxu0 0.0
    %1151 = vmatpush1.msra.mxu0 0.0
    %1152 = vmatprep.subr.mxu0 0.0
    %1153 = vmatpush1.msra.mxu0 0.0
    %1154 = vmatprep.subr.mxu0 0.0
    %1155 = vmatpush1.msra.mxu0 0.0
    %1156 = vmatprep.subr.mxu0 0.0
    %1157 = vmatpush1.msra.mxu0 0.0
    %1158 = vmatprep.subr.mxu0 0.0
    %1159 = vmatpush1.msra.mxu0 0.0
    %1160 = vmatprep.subr.mxu0 0.0
    %1161 = vmatpush1.msra.mxu0 0.0
    %1162 = vmatprep.subr.mxu0 0.0
    %1163 = vmatpush1.msra.mxu0 0.0
    %1164 = vmatprep.subr.mxu0 0.0
    %1165 = vmatpush1.msra.mxu0 0.0
    %1166 = vmatprep.subr.mxu0 0.0
    %1167 = vmatpush1.msra.mxu0 0.0
    %1168 = vmatprep.subr.mxu0 0.0
    %1169 = vmatpush1.msra.mxu0 0.0
    %1170 = vmatprep.subr.mxu0 0.0
    %1171 = vmatpush1.msra.mxu0 0.0
    %1172 = vmatprep.subr.mxu0 0.0
    %1173 = vmatpush1.msra.mxu0 0.0
    %1174 = vmatprep.subr.mxu0 0.0
    %1175 = vmatpush1.msra.mxu0 0.0
    %1176 = vmatprep.subr.mxu0 0.0
    %1177 = vmatpush1.msra.mxu0 0.0
    %1178 = vmatprep.subr.mxu0 0.0
    %1179 = vmatpush1.msra.mxu0 0.0
    %1180 = vmatprep.subr.mxu0 0.0
    %1181 = vmatpush1.msra.mxu0 0.0
    %1182 = vmatprep.subr.mxu0 0.0
    %1183 = vmatpush1.msra.mxu0 0.0
    %1184 = vmatprep.subr.mxu0 0.0
    %1185 = vmatpush1.msra.mxu0 0.0
    %1186 = vmatprep.subr.mxu0 0.0
    %1187 = vmatpush1.msra.mxu0 0.0
    %1188 = vmatprep.subr.mxu0 0.0
    %1189 = vmatpush1.msra.mxu0 0.0
    %1190 = vmatprep.subr.mxu0 0.0
    %1191 = vmatpush1.msra.mxu0 0.0
    %1192 = vmatprep.subr.mxu0 0.0
    %1193 = vmatpush1.msra.mxu0 0.0
    %1194 = vmatprep.mubr.f32.mxu0 0.0
    %1195 = vmatmul.mubr.f32.gmra.mrb[0].mxu0 %v485
    %v1196 = vpop.f32.mrb[0].mxu0
    %v1197 = vadd.f32 0.0, %v1196
    %v1198 = vpop.f32.mrb[0].mxu0
    %1199 = vmatprep.mubr.f32.mxu0 0.0
    %1200 = vmatmul.mubr.f32.gmra.mrb[0].mxu0 %v488
    %v1201 = vpop.f32.mrb[0].mxu0
    %v1202 = vadd.f32 0.0, %v1201
    %v1203 = vpop.f32.mrb[0].mxu0
    %1204 = vdwg.mxu0
    %v1205 = vadd.f32 %v1128, %v1197
    %v1206 = vadd.f32 %v1129, %v1202
    %1207 = vmatprep.subr.mxu0 0.0
    %1208 = vmatpush1.msra.mxu0 %v970
    %1209 = vmatprep.subr.mxu0 0.0
    %1210 = vmatpush1.msra.mxu0 %v976
    %1211 = vmatprep.subr.mxu0 0.0
    %1212 = vmatpush1.msra.mxu0 0.0
    %1213 = vmatprep.subr.mxu0 0.0
    %1214 = vmatpush1.msra.mxu0 0.0
    %1215 = vmatprep.subr.mxu0 0.0
    %1216 = vmatpush1.msra.mxu0 0.0
    %1217 = vmatprep.subr.mxu0 0.0
    %1218 = vmatpush1.msra.mxu0 0.0
    %1219 = vmatprep.subr.mxu0 0.0
    %1220 = vmatpush1.msra.mxu0 0.0
    %1221 = vmatprep.subr.mxu0 0.0
    %1222 = vmatpush1.msra.mxu0 0.0
    %1223 = vmatprep.subr.mxu0 0.0
    %1224 = vmatpush1.msra.mxu0 0.0
    %1225 = vmatprep.subr.mxu0 0.0
    %1226 = vmatpush1.msra.mxu0 0.0
    %1227 = vmatprep.subr.mxu0 0.0
    %1228 = vmatpush1.msra.mxu0 0.0
    %1229 = vmatprep.subr.mxu0 0.0
    %1230 = vmatpush1.msra.mxu0 0.0
    %1231 = vmatprep.subr.mxu0 0.0
    %1232 = vmatpush1.msra.mxu0 0.0
    %1233 = vmatprep.subr.mxu0 0.0
    %1234 = vmatpush1.msra.mxu0 0.0
    %1235 = vmatprep.subr.mxu0 0.0
    %1236 = vmatpush1.msra.mxu0 0.0
    %1237 = vmatprep.subr.mxu0 0.0
    %1238 = vmatpush1.msra.mxu0 0.0
    %1239 = vmatprep.subr.mxu0 0.0
    %1240 = vmatpush1.msra.mxu0 0.0
    %1241 = vmatprep.subr.mxu0 0.0
    %1242 = vmatpush1.msra.mxu0 0.0
    %1243 = vmatprep.subr.mxu0 0.0
    %1244 = vmatpush1.msra.mxu0 0.0
    %1245 = vmatprep.subr.mxu0 0.0
    %1246 = vmatpush1.msra.mxu0 0.0
    %1247 = vmatprep.subr.mxu0 0.0
    %1248 = vmatpush1.msra.mxu0 0.0
    %1249 = vmatprep.subr.mxu0 0.0
    %1250 = vmatpush1.msra.mxu0 0.0
    %1251 = vmatprep.subr.mxu0 0.0
    %1252 = vmatpush1.msra.mxu0 0.0
    %1253 = vmatprep.subr.mxu0 0.0
    %1254 = vmatpush1.msra.mxu0 0.0
    %1255 = vmatprep.subr.mxu0 0.0
    %1256 = vmatpush1.msra.mxu0 0.0
    %1257 = vmatprep.subr.mxu0 0.0
    %1258 = vmatpush1.msra.mxu0 0.0
    %1259 = vmatprep.subr.mxu0 0.0
    %1260 = vmatpush1.msra.mxu0 0.0
    %1261 = vmatprep.subr.mxu0 0.0
    %1262 = vmatpush1.msra.mxu0 0.0
    %1263 = vmatprep.subr.mxu0 0.0
    %1264 = vmatpush1.msra.mxu0 0.0
    %1265 = vmatprep.subr.mxu0 0.0
    %1266 = vmatpush1.msra.mxu0 0.0
    %1267 = vmatprep.subr.mxu0 0.0
    %1268 = vmatpush1.msra.mxu0 0.0
    %1269 = vmatprep.subr.mxu0 0.0
    %1270 = vmatpush1.msra.mxu0 0.0
    %1271 = vmatprep.mubr.f32.mxu0 0.0
    %1272 = vmatmul.mubr.f32.gmra.mrb[0].mxu0 %v568
    %v1273 = vpop.f32.mrb[0].mxu0
    %v1274 = vadd.f32 0.0, %v1273
    %v1275 = vpop.f32.mrb[0].mxu0
    %1276 = vmatprep.mubr.f32.mxu0 0.0
    %1277 = vmatmul.mubr.f32.gmra.mrb[0].mxu0 %v571
    %v1278 = vpop.f32.mrb[0].mxu0
    %v1279 = vadd.f32 0.0, %v1278
    %v1280 = vpop.f32.mrb[0].mxu0
    %1281 = vdwg.mxu0
    %v1282 = vadd.f32 %v1205, %v1274
    %v1283 = vadd.f32 %v1206, %v1279
    %1284 = vmatprep.subr.mxu0 0.0
    %1285 = vmatpush1.msra.mxu0 %v1045
    %1286 = vmatprep.subr.mxu0 0.0
    %1287 = vmatpush1.msra.mxu0 %v1050
    %1288 = vmatprep.subr.mxu0 0.0
    %1289 = vmatpush1.msra.mxu0 0.0
    %1290 = vmatprep.subr.mxu0 0.0
    %1291 = vmatpush1.msra.mxu0 0.0
    %1292 = vmatprep.subr.mxu0 0.0
    %1293 = vmatpush1.msra.mxu0 0.0
    %1294 = vmatprep.subr.mxu0 0.0
    %1295 = vmatpush1.msra.mxu0 0.0
    %1296 = vmatprep.subr.mxu0 0.0
    %1297 = vmatpush1.msra.mxu0 0.0
    %1298 = vmatprep.subr.mxu0 0.0
    %1299 = vmatpush1.msra.mxu0 0.0
    %1300 = vmatprep.subr.mxu0 0.0
    %1301 = vmatpush1.msra.mxu0 0.0
    %1302 = vmatprep.subr.mxu0 0.0
    %1303 = vmatpush1.msra.mxu0 0.0
    %1304 = vmatprep.subr.mxu0 0.0
    %1305 = vmatpush1.msra.mxu0 0.0
    %1306 = vmatprep.subr.mxu0 0.0
    %1307 = vmatpush1.msra.mxu0 0.0
    %1308 = vmatprep.subr.mxu0 0.0
    %1309 = vmatpush1.msra.mxu0 0.0
    %1310 = vmatprep.subr.mxu0 0.0
    %1311 = vmatpush1.msra.mxu0 0.0
    %1312 = vmatprep.subr.mxu0 0.0
    %1313 = vmatpush1.msra.mxu0 0.0
    %1314 = vmatprep.subr.mxu0 0.0
    %1315 = vmatpush1.msra.mxu0 0.0
    %1316 = vmatprep.subr.mxu0 0.0
    %1317 = vmatpush1.msra.mxu0 0.0
    %1318 = vmatprep.subr.mxu0 0.0
    %1319 = vmatpush1.msra.mxu0 0.0
    %1320 = vmatprep.subr.mxu0 0.0
    %1321 = vmatpush1.msra.mxu0 0.0
    %1322 = vmatprep.subr.mxu0 0.0
    %1323 = vmatpush1.msra.mxu0 0.0
    %1324 = vmatprep.subr.mxu0 0.0
    %1325 = vmatpush1.msra.mxu0 0.0
    %1326 = vmatprep.subr.mxu0 0.0
    %1327 = vmatpush1.msra.mxu0 0.0
    %1328 = vmatprep.subr.mxu0 0.0
    %1329 = vmatpush1.msra.mxu0 0.0
    %1330 = vmatprep.subr.mxu0 0.0
    %1331 = vmatpush1.msra.mxu0 0.0
    %1332 = vmatprep.subr.mxu0 0.0
    %1333 = vmatpush1.msra.mxu0 0.0
    %1334 = vmatprep.subr.mxu0 0.0
    %1335 = vmatpush1.msra.mxu0 0.0
    %1336 = vmatprep.subr.mxu0 0.0
    %1337 = vmatpush1.msra.mxu0 0.0
    %1338 = vmatprep.subr.mxu0 0.0
    %1339 = vmatpush1.msra.mxu0 0.0
    %1340 = vmatprep.subr.mxu0 0.0
    %1341 = vmatpush1.msra.mxu0 0.0
    %1342 = vmatprep.subr.mxu0 0.0
    %1343 = vmatpush1.msra.mxu0 0.0
    %1344 = vmatprep.subr.mxu0 0.0
    %1345 = vmatpush1.msra.mxu0 0.0
    %1346 = vmatprep.subr.mxu0 0.0
    %1347 = vmatpush1.msra.mxu0 0.0
    %1348 = vmatprep.mubr.f32.mxu0 0.0
    %1349 = vmatmul.mubr.f32.gmra.mrb[0].mxu0 %v651
    %v1350 = vpop.f32.mrb[0].mxu0
    %v1351 = vadd.f32 0.0, %v1350
    %v1352 = vpop.f32.mrb[0].mxu0
    %1353 = vmatprep.mubr.f32.mxu0 0.0
    %1354 = vmatmul.mubr.f32.gmra.mrb[0].mxu0 %v654
    %v1355 = vpop.f32.mrb[0].mxu0
    %v1356 = vadd.f32 0.0, %v1355
    %v1357 = vpop.f32.mrb[0].mxu0
    %1358 = vdwg.mxu0
    %v1359 = vadd.f32 %v1282, %v1351
    %v1360 = vadd.f32 %v1283, %v1356
    %v1362 = vlaneseq
    %v1363 = vshrl.u32 %v1362, 7
    %v1364 = vsub.s32 0, %v1363
    %v1365 = vrot.slane %v823, %v1364
    %v1367 = vadd.f32 %v1359, %v1365
    %v1368 = vadd.f32 %v1360, %v1365
    %v1369 = vmax.f32 %v1367, 0.0
    %v1370 = vmax.f32 %v1368, 0.0
    %v1371 = vld [vmem:[#allocation6] sm:$0xff]
    %v1372 = vld [vmem:[#allocation6 + $0x8] sm:$0xff]
    %v1373 = vld [vmem:[#allocation6 + $0x10] sm:$0xff]
    %v1374 = vld [vmem:[#allocation6 + $0x18] sm:$0xff]
    %v1375 = vld [vmem:[#allocation6 + $0x20] sm:$0xff]
    %v1376 = vld [vmem:[#allocation6 + $0x28] sm:$0xff]
    %v1377 = vld [vmem:[#allocation6 + $0x30] sm:$0xff]
    %v1378 = vld [vmem:[#allocation6 + $0x38] sm:$0xff]
    %v1379 = vld [vmem:[#allocation6 + $0x40] sm:$0xff]
    %v1380 = vld [vmem:[#allocation6 + $0x48] sm:$0xff]
    %v1381 = vld [vmem:[#allocation6 + $0x50] sm:$0xff]
    %v1382 = vld [vmem:[#allocation6 + $0x58] sm:$0xff]
    %v1383 = vld [vmem:[#allocation6 + $0x60] sm:$0xff]
    %v1384 = vld [vmem:[#allocation6 + $0x68] sm:$0xff]
    %v1385 = vld [vmem:[#allocation6 + $0x70] sm:$0xff]
    %v1386 = vld [vmem:[#allocation6 + $0x78] sm:$0xff]
    %v1387 = vld [vmem:[#allocation6 + $0x80] sm:$0xff]
    %v1388 = vld [vmem:[#allocation6 + $0x88] sm:$0xff]
    %v1389 = vld [vmem:[#allocation6 + $0x90] sm:$0xff]
    %v1390 = vld [vmem:[#allocation6 + $0x98] sm:$0xff]
    %v1391 = vld [vmem:[#allocation6 + $0xa0] sm:$0xff]
    %v1392 = vld [vmem:[#allocation6 + $0xa8] sm:$0xff]
    %v1393 = vld [vmem:[#allocation6 + $0xb0] sm:$0xff]
    %v1394 = vld [vmem:[#allocation6 + $0xb8] sm:$0xff]
    %v1395 = vld [vmem:[#allocation6 + $0xc0] sm:$0xff]
    %v1396 = vld [vmem:[#allocation6 + $0xc8] sm:$0xff]
    %v1397 = vld [vmem:[#allocation6 + $0xd0] sm:$0xff]
    %v1398 = vld [vmem:[#allocation6 + $0xd8] sm:$0xff]
    %v1399 = vld [vmem:[#allocation6 + $0xe0] sm:$0xff]
    %v1400 = vld [vmem:[#allocation6 + $0xe8] sm:$0xff]
    %v1401 = vld [vmem:[#allocation6 + $0xf0] sm:$0xff]
    %v1402 = vld [vmem:[#allocation6 + $0xf8] sm:$0xff]
    %v1403 = vld [vmem:[#allocation6 + $0x100] sm:$0xff]
    %v1404 = vld [vmem:[#allocation6 + $0x108] sm:$0xff]
    %v1405 = vld [vmem:[#allocation6 + $0x110] sm:$0xff]
    %v1406 = vld [vmem:[#allocation6 + $0x118] sm:$0xff]
    %v1407 = vld [vmem:[#allocation6 + $0x120] sm:$0xff]
    %v1408 = vld [vmem:[#allocation6 + $0x128] sm:$0xff]
    %v1409 = vld [vmem:[#allocation6 + $0x130] sm:$0xff]
    %v1410 = vld [vmem:[#allocation6 + $0x138] sm:$0xff]
    %v1411 = vld [vmem:[#allocation6 + $0x140] sm:$0xff]
    %v1412 = vld [vmem:[#allocation6 + $0x148] sm:$0xff]
    %v1413 = vld [vmem:[#allocation6 + $0x150] sm:$0xff]
    %v1414 = vld [vmem:[#allocation6 + $0x158] sm:$0xff]
    %v1415 = vld [vmem:[#allocation6 + $0x160] sm:$0xff]
    %v1416 = vld [vmem:[#allocation6 + $0x168] sm:$0xff]
    %v1417 = vld [vmem:[#allocation6 + $0x170] sm:$0xff]
    %v1418 = vld [vmem:[#allocation6 + $0x178] sm:$0xff]
    %v1419 = vld [vmem:[#allocation6 + $0x180] sm:$0xff]
    %v1420 = vld [vmem:[#allocation6 + $0x188] sm:$0xff]
    %v1421 = vld [vmem:[#allocation6 + $0x190] sm:$0xff]
    %v1422 = vld [vmem:[#allocation6 + $0x198] sm:$0xff]
    %v1423 = vld [vmem:[#allocation6 + $0x1a0] sm:$0xff]
    %v1424 = vld [vmem:[#allocation6 + $0x1a8] sm:$0xff]
    %v1425 = vld [vmem:[#allocation6 + $0x1b0] sm:$0xff]
    %v1426 = vld [vmem:[#allocation6 + $0x1b8] sm:$0xff]
    %v1427 = vld [vmem:[#allocation6 + $0x1c0] sm:$0xff]
    %v1428 = vld [vmem:[#allocation6 + $0x1c8] sm:$0xff]
    %v1429 = vld [vmem:[#allocation6 + $0x1d0] sm:$0xff]
    %v1430 = vld [vmem:[#allocation6 + $0x1d8] sm:$0xff]
    %v1431 = vld [vmem:[#allocation6 + $0x1e0] sm:$0xff]
    %v1432 = vld [vmem:[#allocation6 + $0x1e8] sm:$0xff]
    %v1433 = vld [vmem:[#allocation6 + $0x1f0] sm:$0xff]
    %v1434 = vld [vmem:[#allocation6 + $0x1f8] sm:$0xff]
    %v1435 = vld [vmem:[#allocation6 + $0x200] sm:$0xff]
    %v1436 = vld [vmem:[#allocation6 + $0x208] sm:$0xff]
    %v1437 = vld [vmem:[#allocation6 + $0x210] sm:$0xff]
    %v1438 = vld [vmem:[#allocation6 + $0x218] sm:$0xff]
    %v1439 = vld [vmem:[#allocation6 + $0x220] sm:$0xff]
    %v1440 = vld [vmem:[#allocation6 + $0x228] sm:$0xff]
    %v1441 = vld [vmem:[#allocation6 + $0x230] sm:$0xff]
    %v1442 = vld [vmem:[#allocation6 + $0x238] sm:$0xff]
    %v1443 = vld [vmem:[#allocation6 + $0x240] sm:$0xff]
    %v1444 = vld [vmem:[#allocation6 + $0x248] sm:$0xff]
    %v1445 = vld [vmem:[#allocation6 + $0x250] sm:$0xff]
    %v1446 = vld [vmem:[#allocation6 + $0x258] sm:$0xff]
    %v1447 = vld [vmem:[#allocation6 + $0x260] sm:$0xff]
    %v1448 = vld [vmem:[#allocation6 + $0x268] sm:$0xff]
    %v1449 = vld [vmem:[#allocation6 + $0x270] sm:$0xff]
    %v1450 = vld [vmem:[#allocation6 + $0x278] sm:$0xff]
    %v1451 = vld [vmem:[%s7] sm:$0x1]
    %1452 = vmatprep.subr.mxu0 %v1372
    %1453 = vmatpush1.msra.mxu0 %v1371
    %1454 = vmatprep.subr.mxu0 %v1377
    %1455 = vmatpush1.msra.mxu0 %v1376
    %1456 = vmatprep.subr.mxu0 %v1382
    %1457 = vmatpush1.msra.mxu0 %v1381
    %1458 = vmatprep.subr.mxu0 %v1387
    %1459 = vmatpush1.msra.mxu0 %v1386
    %1460 = vmatprep.subr.mxu0 %v1392
    %1461 = vmatpush1.msra.mxu0 %v1391
    %1462 = vmatprep.subr.mxu0 %v1397
    %1463 = vmatpush1.msra.mxu0 %v1396
    %1464 = vmatprep.subr.mxu0 %v1402
    %1465 = vmatpush1.msra.mxu0 %v1401
    %1466 = vmatprep.subr.mxu0 %v1407
    %1467 = vmatpush1.msra.mxu0 %v1406
    %1468 = vmatprep.subr.mxu0 %v1412
    %1469 = vmatpush1.msra.mxu0 %v1411
    %1470 = vmatprep.subr.mxu0 %v1417
    %1471 = vmatpush1.msra.mxu0 %v1416
    %1472 = vmatprep.subr.mxu0 %v1422
    %1473 = vmatpush1.msra.mxu0 %v1421
    %1474 = vmatprep.subr.mxu0 %v1427
    %1475 = vmatpush1.msra.mxu0 %v1426
    %1476 = vmatprep.subr.mxu0 %v1432
    %1477 = vmatpush1.msra.mxu0 %v1431
    %1478 = vmatprep.subr.mxu0 %v1437
    %1479 = vmatpush1.msra.mxu0 %v1436
    %1480 = vmatprep.subr.mxu0 %v1442
    %1481 = vmatpush1.msra.mxu0 %v1441
    %1482 = vmatprep.subr.mxu0 %v1447
    %1483 = vmatpush1.msra.mxu0 %v1446
    %1484 = vmatprep.subr.mxu0 0.0
    %1485 = vmatpush1.msra.mxu0 0.0
    %1486 = vmatprep.subr.mxu0 0.0
    %1487 = vmatpush1.msra.mxu0 0.0
    %1488 = vmatprep.subr.mxu0 0.0
    %1489 = vmatpush1.msra.mxu0 0.0
    %1490 = vmatprep.subr.mxu0 0.0
    %1491 = vmatpush1.msra.mxu0 0.0
    %1492 = vmatprep.subr.mxu0 0.0
    %1493 = vmatpush1.msra.mxu0 0.0
    %1494 = vmatprep.subr.mxu0 0.0
    %1495 = vmatpush1.msra.mxu0 0.0
    %1496 = vmatprep.subr.mxu0 0.0
    %1497 = vmatpush1.msra.mxu0 0.0
    %1498 = vmatprep.subr.mxu0 0.0
    %1499 = vmatpush1.msra.mxu0 0.0
    %1500 = vmatprep.subr.mxu0 0.0
    %1501 = vmatpush1.msra.mxu0 0.0
    %1502 = vmatprep.subr.mxu0 0.0
    %1503 = vmatpush1.msra.mxu0 0.0
    %1504 = vmatprep.subr.mxu0 0.0
    %1505 = vmatpush1.msra.mxu0 0.0
    %1506 = vmatprep.subr.mxu0 0.0
    %1507 = vmatpush1.msra.mxu0 0.0
    %1508 = vmatprep.subr.mxu0 0.0
    %1509 = vmatpush1.msra.mxu0 0.0
    %1510 = vmatprep.subr.mxu0 0.0
    %1511 = vmatpush1.msra.mxu0 0.0
    %1512 = vmatprep.subr.mxu0 0.0
    %1513 = vmatpush1.msra.mxu0 0.0
    %1514 = vmatprep.subr.mxu0 0.0
    %1515 = vmatpush1.msra.mxu0 0.0
    %1516 = vmatprep.mubr.f32.mxu0 0.0
    %1517 = vmatmul.mubr.f32.gmra.mrb[0].mxu0 %v1369
    %v1518 = vpop.f32.mrb[0].mxu0
    %v1519 = vadd.f32 0.0, %v1518
    %v1520 = vpop.f32.mrb[0].mxu0
    %v1521 = vadd.f32 0.0, %v1520
    %1522 = vmatprep.mubr.f32.mxu0 0.0
    %1523 = vmatmul.mubr.f32.gmra.mrb[0].mxu0 %v1370
    %v1524 = vpop.f32.mrb[0].mxu0
    %v1525 = vadd.f32 0.0, %v1524
    %v1526 = vpop.f32.mrb[0].mxu0
    %v1527 = vadd.f32 0.0, %v1526
    %1528 = vdwg.mxu0
    %1529 = vmatprep.subr.mxu0 %v1374
    %1530 = vmatpush1.msra.mxu0 %v1373
    %1531 = vmatprep.subr.mxu0 %v1379
    %1532 = vmatpush1.msra.mxu0 %v1378
    %1533 = vmatprep.subr.mxu0 %v1384
    %1534 = vmatpush1.msra.mxu0 %v1383
    %1535 = vmatprep.subr.mxu0 %v1389
    %1536 = vmatpush1.msra.mxu0 %v1388
    %1537 = vmatprep.subr.mxu0 %v1394
    %1538 = vmatpush1.msra.mxu0 %v1393
    %1539 = vmatprep.subr.mxu0 %v1399
    %1540 = vmatpush1.msra.mxu0 %v1398
    %1541 = vmatprep.subr.mxu0 %v1404
    %1542 = vmatpush1.msra.mxu0 %v1403
    %1543 = vmatprep.subr.mxu0 %v1409
    %1544 = vmatpush1.msra.mxu0 %v1408
    %1545 = vmatprep.subr.mxu0 %v1414
    %1546 = vmatpush1.msra.mxu0 %v1413
    %1547 = vmatprep.subr.mxu0 %v1419
    %1548 = vmatpush1.msra.mxu0 %v1418
    %1549 = vmatprep.subr.mxu0 %v1424
    %1550 = vmatpush1.msra.mxu0 %v1423
    %1551 = vmatprep.subr.mxu0 %v1429
    %1552 = vmatpush1.msra.mxu0 %v1428
    %1553 = vmatprep.subr.mxu0 %v1434
    %1554 = vmatpush1.msra.mxu0 %v1433
    %1555 = vmatprep.subr.mxu0 %v1439
    %1556 = vmatpush1.msra.mxu0 %v1438
    %1557 = vmatprep.subr.mxu0 %v1444
    %1558 = vmatpush1.msra.mxu0 %v1443
    %1559 = vmatprep.subr.mxu0 %v1449
    %1560 = vmatpush1.msra.mxu0 %v1448
    %1561 = vmatprep.subr.mxu0 0.0
    %1562 = vmatpush1.msra.mxu0 0.0
    %1563 = vmatprep.subr.mxu0 0.0
    %1564 = vmatpush1.msra.mxu0 0.0
    %1565 = vmatprep.subr.mxu0 0.0
    %1566 = vmatpush1.msra.mxu0 0.0
    %1567 = vmatprep.subr.mxu0 0.0
    %1568 = vmatpush1.msra.mxu0 0.0
    %1569 = vmatprep.subr.mxu0 0.0
    %1570 = vmatpush1.msra.mxu0 0.0
    %1571 = vmatprep.subr.mxu0 0.0
    %1572 = vmatpush1.msra.mxu0 0.0
    %1573 = vmatprep.subr.mxu0 0.0
    %1574 = vmatpush1.msra.mxu0 0.0
    %1575 = vmatprep.subr.mxu0 0.0
    %1576 = vmatpush1.msra.mxu0 0.0
    %1577 = vmatprep.subr.mxu0 0.0
    %1578 = vmatpush1.msra.mxu0 0.0
    %1579 = vmatprep.subr.mxu0 0.0
    %1580 = vmatpush1.msra.mxu0 0.0
    %1581 = vmatprep.subr.mxu0 0.0
    %1582 = vmatpush1.msra.mxu0 0.0
    %1583 = vmatprep.subr.mxu0 0.0
    %1584 = vmatpush1.msra.mxu0 0.0
    %1585 = vmatprep.subr.mxu0 0.0
    %1586 = vmatpush1.msra.mxu0 0.0
    %1587 = vmatprep.subr.mxu0 0.0
    %1588 = vmatpush1.msra.mxu0 0.0
    %1589 = vmatprep.subr.mxu0 0.0
    %1590 = vmatpush1.msra.mxu0 0.0
    %1591 = vmatprep.subr.mxu0 0.0
    %1592 = vmatpush1.msra.mxu0 0.0
    %1593 = vmatprep.mubr.f32.mxu0 0.0
    %1594 = vmatmul.mubr.f32.gmra.mrb[0].mxu0 %v1369
    %v1595 = vpop.f32.mrb[0].mxu0
    %v1596 = vadd.f32 0.0, %v1595
    %v1597 = vpop.f32.mrb[0].mxu0
    %v1598 = vadd.f32 0.0, %v1597
    %1599 = vmatprep.mubr.f32.mxu0 0.0
    %1600 = vmatmul.mubr.f32.gmra.mrb[0].mxu0 %v1370
    %v1601 = vpop.f32.mrb[0].mxu0
    %v1602 = vadd.f32 0.0, %v1601
    %v1603 = vpop.f32.mrb[0].mxu0
    %v1604 = vadd.f32 0.0, %v1603
    %1605 = vdwg.mxu0
    %1606 = vmatprep.subr.mxu0 0.0
    %1607 = vmatpush1.msra.mxu0 %v1375
    %1608 = vmatprep.subr.mxu0 0.0
    %1609 = vmatpush1.msra.mxu0 %v1380
    %1610 = vmatprep.subr.mxu0 0.0
    %1611 = vmatpush1.msra.mxu0 %v1385
    %1612 = vmatprep.subr.mxu0 0.0
    %1613 = vmatpush1.msra.mxu0 %v1390
    %1614 = vmatprep.subr.mxu0 0.0
    %1615 = vmatpush1.msra.mxu0 %v1395
    %1616 = vmatprep.subr.mxu0 0.0
    %1617 = vmatpush1.msra.mxu0 %v1400
    %1618 = vmatprep.subr.mxu0 0.0
    %1619 = vmatpush1.msra.mxu0 %v1405
    %1620 = vmatprep.subr.mxu0 0.0
    %1621 = vmatpush1.msra.mxu0 %v1410
    %1622 = vmatprep.subr.mxu0 0.0
    %1623 = vmatpush1.msra.mxu0 %v1415
    %1624 = vmatprep.subr.mxu0 0.0
    %1625 = vmatpush1.msra.mxu0 %v1420
    %1626 = vmatprep.subr.mxu0 0.0
    %1627 = vmatpush1.msra.mxu0 %v1425
    %1628 = vmatprep.subr.mxu0 0.0
    %1629 = vmatpush1.msra.mxu0 %v1430
    %1630 = vmatprep.subr.mxu0 0.0
    %1631 = vmatpush1.msra.mxu0 %v1435
    %1632 = vmatprep.subr.mxu0 0.0
    %1633 = vmatpush1.msra.mxu0 %v1440
    %1634 = vmatprep.subr.mxu0 0.0
    %1635 = vmatpush1.msra.mxu0 %v1445
    %1636 = vmatprep.subr.mxu0 0.0
    %1637 = vmatpush1.msra.mxu0 %v1450
    %1638 = vmatprep.subr.mxu0 0.0
    %1639 = vmatpush1.msra.mxu0 0.0
    %1640 = vmatprep.subr.mxu0 0.0
    %1641 = vmatpush1.msra.mxu0 0.0
    %1642 = vmatprep.subr.mxu0 0.0
    %1643 = vmatpush1.msra.mxu0 0.0
    %1644 = vmatprep.subr.mxu0 0.0
    %1645 = vmatpush1.msra.mxu0 0.0
    %1646 = vmatprep.subr.mxu0 0.0
    %1647 = vmatpush1.msra.mxu0 0.0
    %1648 = vmatprep.subr.mxu0 0.0
    %1649 = vmatpush1.msra.mxu0 0.0
    %1650 = vmatprep.subr.mxu0 0.0
    %1651 = vmatpush1.msra.mxu0 0.0
    %1652 = vmatprep.subr.mxu0 0.0
    %1653 = vmatpush1.msra.mxu0 0.0
    %1654 = vmatprep.subr.mxu0 0.0
    %1655 = vmatpush1.msra.mxu0 0.0
    %1656 = vmatprep.subr.mxu0 0.0
    %1657 = vmatpush1.msra.mxu0 0.0
    %1658 = vmatprep.subr.mxu0 0.0
    %1659 = vmatpush1.msra.mxu0 0.0
    %1660 = vmatprep.subr.mxu0 0.0
    %1661 = vmatpush1.msra.mxu0 0.0
    %1662 = vmatprep.subr.mxu0 0.0
    %1663 = vmatpush1.msra.mxu0 0.0
    %1664 = vmatprep.subr.mxu0 0.0
    %1665 = vmatpush1.msra.mxu0 0.0
    %1666 = vmatprep.subr.mxu0 0.0
    %1667 = vmatpush1.msra.mxu0 0.0
    %1668 = vmatprep.subr.mxu0 0.0
    %1669 = vmatpush1.msra.mxu0 0.0
    %1670 = vmatprep.mubr.f32.mxu0 0.0
    %1671 = vmatmul.mubr.f32.gmra.mrb[0].mxu0 %v1369
    %v1672 = vpop.f32.mrb[0].mxu0
    %v1673 = vadd.f32 0.0, %v1672
    %v1674 = vpop.f32.mrb[0].mxu0
    %1675 = vmatprep.mubr.f32.mxu0 0.0
    %1676 = vmatmul.mubr.f32.gmra.mrb[0].mxu0 %v1370
    %v1677 = vpop.f32.mrb[0].mxu0
    %v1678 = vadd.f32 0.0, %v1677
    %v1679 = vpop.f32.mrb[0].mxu0
    %1680 = vdwg.mxu0
    %1681 = vmatprep.subr.mxu0 0.0
    %1682 = vmatpush1.msra.mxu0 %v1521
    %1683 = vmatprep.subr.mxu0 0.0
    %1684 = vmatpush1.msra.mxu0 %v1527
    %1685 = vmatprep.subr.mxu0 0.0
    %1686 = vmatpush1.msra.mxu0 0.0
    %1687 = vmatprep.subr.mxu0 0.0
    %1688 = vmatpush1.msra.mxu0 0.0
    %1689 = vmatprep.subr.mxu0 0.0
    %1690 = vmatpush1.msra.mxu0 0.0
    %1691 = vmatprep.subr.mxu0 0.0
    %1692 = vmatpush1.msra.mxu0 0.0
    %1693 = vmatprep.subr.mxu0 0.0
    %1694 = vmatpush1.msra.mxu0 0.0
    %1695 = vmatprep.subr.mxu0 0.0
    %1696 = vmatpush1.msra.mxu0 0.0
    %1697 = vmatprep.subr.mxu0 0.0
    %1698 = vmatpush1.msra.mxu0 0.0
    %1699 = vmatprep.subr.mxu0 0.0
    %1700 = vmatpush1.msra.mxu0 0.0
    %1701 = vmatprep.subr.mxu0 0.0
    %1702 = vmatpush1.msra.mxu0 0.0
    %1703 = vmatprep.subr.mxu0 0.0
    %1704 = vmatpush1.msra.mxu0 0.0
    %1705 = vmatprep.subr.mxu0 0.0
    %1706 = vmatpush1.msra.mxu0 0.0
    %1707 = vmatprep.subr.mxu0 0.0
    %1708 = vmatpush1.msra.mxu0 0.0
    %1709 = vmatprep.subr.mxu0 0.0
    %1710 = vmatpush1.msra.mxu0 0.0
    %1711 = vmatprep.subr.mxu0 0.0
    %1712 = vmatpush1.msra.mxu0 0.0
    %1713 = vmatprep.subr.mxu0 0.0
    %1714 = vmatpush1.msra.mxu0 0.0
    %1715 = vmatprep.subr.mxu0 0.0
    %1716 = vmatpush1.msra.mxu0 0.0
    %1717 = vmatprep.subr.mxu0 0.0
    %1718 = vmatpush1.msra.mxu0 0.0
    %1719 = vmatprep.subr.mxu0 0.0
    %1720 = vmatpush1.msra.mxu0 0.0
    %1721 = vmatprep.subr.mxu0 0.0
    %1722 = vmatpush1.msra.mxu0 0.0
    %1723 = vmatprep.subr.mxu0 0.0
    %1724 = vmatpush1.msra.mxu0 0.0
    %1725 = vmatprep.subr.mxu0 0.0
    %1726 = vmatpush1.msra.mxu0 0.0
    %1727 = vmatprep.subr.mxu0 0.0
    %1728 = vmatpush1.msra.mxu0 0.0
    %1729 = vmatprep.subr.mxu0 0.0
    %1730 = vmatpush1.msra.mxu0 0.0
    %1731 = vmatprep.subr.mxu0 0.0
    %1732 = vmatpush1.msra.mxu0 0.0
    %1733 = vmatprep.subr.mxu0 0.0
    %1734 = vmatpush1.msra.mxu0 0.0
    %1735 = vmatprep.subr.mxu0 0.0
    %1736 = vmatpush1.msra.mxu0 0.0
    %1737 = vmatprep.subr.mxu0 0.0
    %1738 = vmatpush1.msra.mxu0 0.0
    %1739 = vmatprep.subr.mxu0 0.0
    %1740 = vmatpush1.msra.mxu0 0.0
    %1741 = vmatprep.subr.mxu0 0.0
    %1742 = vmatpush1.msra.mxu0 0.0
    %1743 = vmatprep.subr.mxu0 0.0
    %1744 = vmatpush1.msra.mxu0 0.0
    %1745 = vmatprep.mubr.f32.mxu0 0.0
    %1746 = vmatmul.mubr.f32.gmra.mrb[0].mxu0 %v402
    %v1747 = vpop.f32.mrb[0].mxu0
    %v1748 = vadd.f32 0.0, %v1747
    %v1749 = vpop.f32.mrb[0].mxu0
    %1750 = vmatprep.mubr.f32.mxu0 0.0
    %1751 = vmatmul.mubr.f32.gmra.mrb[0].mxu0 %v405
    %v1752 = vpop.f32.mrb[0].mxu0
    %v1753 = vadd.f32 0.0, %v1752
    %v1754 = vpop.f32.mrb[0].mxu0
    %1755 = vdwg.mxu0
    %v1756 = vadd.f32 %v1519, %v1748
    %v1757 = vadd.f32 %v1525, %v1753
    %1758 = vmatprep.subr.mxu0 0.0
    %1759 = vmatpush1.msra.mxu0 %v1596
    %1760 = vmatprep.subr.mxu0 0.0
    %1761 = vmatpush1.msra.mxu0 %v1602
    %1762 = vmatprep.subr.mxu0 0.0
    %1763 = vmatpush1.msra.mxu0 0.0
    %1764 = vmatprep.subr.mxu0 0.0
    %1765 = vmatpush1.msra.mxu0 0.0
    %1766 = vmatprep.subr.mxu0 0.0
    %1767 = vmatpush1.msra.mxu0 0.0
    %1768 = vmatprep.subr.mxu0 0.0
    %1769 = vmatpush1.msra.mxu0 0.0
    %1770 = vmatprep.subr.mxu0 0.0
    %1771 = vmatpush1.msra.mxu0 0.0
    %1772 = vmatprep.subr.mxu0 0.0
    %1773 = vmatpush1.msra.mxu0 0.0
    %1774 = vmatprep.subr.mxu0 0.0
    %1775 = vmatpush1.msra.mxu0 0.0
    %1776 = vmatprep.subr.mxu0 0.0
    %1777 = vmatpush1.msra.mxu0 0.0
    %1778 = vmatprep.subr.mxu0 0.0
    %1779 = vmatpush1.msra.mxu0 0.0
    %1780 = vmatprep.subr.mxu0 0.0
    %1781 = vmatpush1.msra.mxu0 0.0
    %1782 = vmatprep.subr.mxu0 0.0
    %1783 = vmatpush1.msra.mxu0 0.0
    %1784 = vmatprep.subr.mxu0 0.0
    %1785 = vmatpush1.msra.mxu0 0.0
    %1786 = vmatprep.subr.mxu0 0.0
    %1787 = vmatpush1.msra.mxu0 0.0
    %1788 = vmatprep.subr.mxu0 0.0
    %1789 = vmatpush1.msra.mxu0 0.0
    %1790 = vmatprep.subr.mxu0 0.0
    %1791 = vmatpush1.msra.mxu0 0.0
    %1792 = vmatprep.subr.mxu0 0.0
    %1793 = vmatpush1.msra.mxu0 0.0
    %1794 = vmatprep.subr.mxu0 0.0
    %1795 = vmatpush1.msra.mxu0 0.0
    %1796 = vmatprep.subr.mxu0 0.0
    %1797 = vmatpush1.msra.mxu0 0.0
    %1798 = vmatprep.subr.mxu0 0.0
    %1799 = vmatpush1.msra.mxu0 0.0
    %1800 = vmatprep.subr.mxu0 0.0
    %1801 = vmatpush1.msra.mxu0 0.0
    %1802 = vmatprep.subr.mxu0 0.0
    %1803 = vmatpush1.msra.mxu0 0.0
    %1804 = vmatprep.subr.mxu0 0.0
    %1805 = vmatpush1.msra.mxu0 0.0
    %1806 = vmatprep.subr.mxu0 0.0
    %1807 = vmatpush1.msra.mxu0 0.0
    %1808 = vmatprep.subr.mxu0 0.0
    %1809 = vmatpush1.msra.mxu0 0.0
    %1810 = vmatprep.subr.mxu0 0.0
    %1811 = vmatpush1.msra.mxu0 0.0
    %1812 = vmatprep.subr.mxu0 0.0
    %1813 = vmatpush1.msra.mxu0 0.0
    %1814 = vmatprep.subr.mxu0 0.0
    %1815 = vmatpush1.msra.mxu0 0.0
    %1816 = vmatprep.subr.mxu0 0.0
    %1817 = vmatpush1.msra.mxu0 0.0
    %1818 = vmatprep.subr.mxu0 0.0
    %1819 = vmatpush1.msra.mxu0 0.0
    %1820 = vmatprep.subr.mxu0 0.0
    %1821 = vmatpush1.msra.mxu0 0.0
    %1822 = vmatprep.mubr.f32.mxu0 0.0
    %1823 = vmatmul.mubr.f32.gmra.mrb[0].mxu0 %v485
    %v1824 = vpop.f32.mrb[0].mxu0
    %v1825 = vadd.f32 0.0, %v1824
    %v1826 = vpop.f32.mrb[0].mxu0
    %1827 = vmatprep.mubr.f32.mxu0 0.0
    %1828 = vmatmul.mubr.f32.gmra.mrb[0].mxu0 %v488
    %v1829 = vpop.f32.mrb[0].mxu0
    %v1830 = vadd.f32 0.0, %v1829
    %v1831 = vpop.f32.mrb[0].mxu0
    %1832 = vdwg.mxu0
    %v1833 = vadd.f32 %v1756, %v1825
    %v1834 = vadd.f32 %v1757, %v1830
    %1835 = vmatprep.subr.mxu0 0.0
    %1836 = vmatpush1.msra.mxu0 %v1598
    %1837 = vmatprep.subr.mxu0 0.0
    %1838 = vmatpush1.msra.mxu0 %v1604
    %1839 = vmatprep.subr.mxu0 0.0
    %1840 = vmatpush1.msra.mxu0 0.0
    %1841 = vmatprep.subr.mxu0 0.0
    %1842 = vmatpush1.msra.mxu0 0.0
    %1843 = vmatprep.subr.mxu0 0.0
    %1844 = vmatpush1.msra.mxu0 0.0
    %1845 = vmatprep.subr.mxu0 0.0
    %1846 = vmatpush1.msra.mxu0 0.0
    %1847 = vmatprep.subr.mxu0 0.0
    %1848 = vmatpush1.msra.mxu0 0.0
    %1849 = vmatprep.subr.mxu0 0.0
    %1850 = vmatpush1.msra.mxu0 0.0
    %1851 = vmatprep.subr.mxu0 0.0
    %1852 = vmatpush1.msra.mxu0 0.0
    %1853 = vmatprep.subr.mxu0 0.0
    %1854 = vmatpush1.msra.mxu0 0.0
    %1855 = vmatprep.subr.mxu0 0.0
    %1856 = vmatpush1.msra.mxu0 0.0
    %1857 = vmatprep.subr.mxu0 0.0
    %1858 = vmatpush1.msra.mxu0 0.0
    %1859 = vmatprep.subr.mxu0 0.0
    %1860 = vmatpush1.msra.mxu0 0.0
    %1861 = vmatprep.subr.mxu0 0.0
    %1862 = vmatpush1.msra.mxu0 0.0
    %1863 = vmatprep.subr.mxu0 0.0
    %1864 = vmatpush1.msra.mxu0 0.0
    %1865 = vmatprep.subr.mxu0 0.0
    %1866 = vmatpush1.msra.mxu0 0.0
    %1867 = vmatprep.subr.mxu0 0.0
    %1868 = vmatpush1.msra.mxu0 0.0
    %1869 = vmatprep.subr.mxu0 0.0
    %1870 = vmatpush1.msra.mxu0 0.0
    %1871 = vmatprep.subr.mxu0 0.0
    %1872 = vmatpush1.msra.mxu0 0.0
    %1873 = vmatprep.subr.mxu0 0.0
    %1874 = vmatpush1.msra.mxu0 0.0
    %1875 = vmatprep.subr.mxu0 0.0
    %1876 = vmatpush1.msra.mxu0 0.0
    %1877 = vmatprep.subr.mxu0 0.0
    %1878 = vmatpush1.msra.mxu0 0.0
    %1879 = vmatprep.subr.mxu0 0.0
    %1880 = vmatpush1.msra.mxu0 0.0
    %1881 = vmatprep.subr.mxu0 0.0
    %1882 = vmatpush1.msra.mxu0 0.0
    %1883 = vmatprep.subr.mxu0 0.0
    %1884 = vmatpush1.msra.mxu0 0.0
    %1885 = vmatprep.subr.mxu0 0.0
    %1886 = vmatpush1.msra.mxu0 0.0
    %1887 = vmatprep.subr.mxu0 0.0
    %1888 = vmatpush1.msra.mxu0 0.0
    %1889 = vmatprep.subr.mxu0 0.0
    %1890 = vmatpush1.msra.mxu0 0.0
    %1891 = vmatprep.subr.mxu0 0.0
    %1892 = vmatpush1.msra.mxu0 0.0
    %1893 = vmatprep.subr.mxu0 0.0
    %1894 = vmatpush1.msra.mxu0 0.0
    %1895 = vmatprep.subr.mxu0 0.0
    %1896 = vmatpush1.msra.mxu0 0.0
    %1897 = vmatprep.subr.mxu0 0.0
    %1898 = vmatpush1.msra.mxu0 0.0
    %1899 = vmatprep.mubr.f32.mxu0 0.0
    %1900 = vmatmul.mubr.f32.gmra.mrb[0].mxu0 %v568
    %v1901 = vpop.f32.mrb[0].mxu0
    %v1902 = vadd.f32 0.0, %v1901
    %v1903 = vpop.f32.mrb[0].mxu0
    %1904 = vmatprep.mubr.f32.mxu0 0.0
    %1905 = vmatmul.mubr.f32.gmra.mrb[0].mxu0 %v571
    %v1906 = vpop.f32.mrb[0].mxu0
    %v1907 = vadd.f32 0.0, %v1906
    %v1908 = vpop.f32.mrb[0].mxu0
    %1909 = vdwg.mxu0
    %v1910 = vadd.f32 %v1833, %v1902
    %v1911 = vadd.f32 %v1834, %v1907
    %1912 = vmatprep.subr.mxu0 0.0
    %1913 = vmatpush1.msra.mxu0 %v1673
    %1914 = vmatprep.subr.mxu0 0.0
    %1915 = vmatpush1.msra.mxu0 %v1678
    %1916 = vmatprep.subr.mxu0 0.0
    %1917 = vmatpush1.msra.mxu0 0.0
    %1918 = vmatprep.subr.mxu0 0.0
    %1919 = vmatpush1.msra.mxu0 0.0
    %1920 = vmatprep.subr.mxu0 0.0
    %1921 = vmatpush1.msra.mxu0 0.0
    %1922 = vmatprep.subr.mxu0 0.0
    %1923 = vmatpush1.msra.mxu0 0.0
    %1924 = vmatprep.subr.mxu0 0.0
    %1925 = vmatpush1.msra.mxu0 0.0
    %1926 = vmatprep.subr.mxu0 0.0
    %1927 = vmatpush1.msra.mxu0 0.0
    %1928 = vmatprep.subr.mxu0 0.0
    %1929 = vmatpush1.msra.mxu0 0.0
    %1930 = vmatprep.subr.mxu0 0.0
    %1931 = vmatpush1.msra.mxu0 0.0
    %1932 = vmatprep.subr.mxu0 0.0
    %1933 = vmatpush1.msra.mxu0 0.0
    %1934 = vmatprep.subr.mxu0 0.0
    %1935 = vmatpush1.msra.mxu0 0.0
    %1936 = vmatprep.subr.mxu0 0.0
    %1937 = vmatpush1.msra.mxu0 0.0
    %1938 = vmatprep.subr.mxu0 0.0
    %1939 = vmatpush1.msra.mxu0 0.0
    %1940 = vmatprep.subr.mxu0 0.0
    %1941 = vmatpush1.msra.mxu0 0.0
    %1942 = vmatprep.subr.mxu0 0.0
    %1943 = vmatpush1.msra.mxu0 0.0
    %1944 = vmatprep.subr.mxu0 0.0
    %1945 = vmatpush1.msra.mxu0 0.0
    %1946 = vmatprep.subr.mxu0 0.0
    %1947 = vmatpush1.msra.mxu0 0.0
    %1948 = vmatprep.subr.mxu0 0.0
    %1949 = vmatpush1.msra.mxu0 0.0
    %1950 = vmatprep.subr.mxu0 0.0
    %1951 = vmatpush1.msra.mxu0 0.0
    %1952 = vmatprep.subr.mxu0 0.0
    %1953 = vmatpush1.msra.mxu0 0.0
    %1954 = vmatprep.subr.mxu0 0.0
    %1955 = vmatpush1.msra.mxu0 0.0
    %1956 = vmatprep.subr.mxu0 0.0
    %1957 = vmatpush1.msra.mxu0 0.0
    %1958 = vmatprep.subr.mxu0 0.0
    %1959 = vmatpush1.msra.mxu0 0.0
    %1960 = vmatprep.subr.mxu0 0.0
    %1961 = vmatpush1.msra.mxu0 0.0
    %1962 = vmatprep.subr.mxu0 0.0
    %1963 = vmatpush1.msra.mxu0 0.0
    %1964 = vmatprep.subr.mxu0 0.0
    %1965 = vmatpush1.msra.mxu0 0.0
    %1966 = vmatprep.subr.mxu0 0.0
    %1967 = vmatpush1.msra.mxu0 0.0
    %1968 = vmatprep.subr.mxu0 0.0
    %1969 = vmatpush1.msra.mxu0 0.0
    %1970 = vmatprep.subr.mxu0 0.0
    %1971 = vmatpush1.msra.mxu0 0.0
    %1972 = vmatprep.subr.mxu0 0.0
    %1973 = vmatpush1.msra.mxu0 0.0
    %1974 = vmatprep.subr.mxu0 0.0
    %1975 = vmatpush1.msra.mxu0 0.0
    %1976 = vmatprep.mubr.f32.mxu0 0.0
    %1977 = vmatmul.mubr.f32.gmra.mrb[0].mxu0 %v651
    %v1978 = vpop.f32.mrb[0].mxu0
    %v1979 = vadd.f32 0.0, %v1978
    %v1980 = vpop.f32.mrb[0].mxu0
    %1981 = vmatprep.mubr.f32.mxu0 0.0
    %1982 = vmatmul.mubr.f32.gmra.mrb[0].mxu0 %v654
    %v1983 = vpop.f32.mrb[0].mxu0
    %v1984 = vadd.f32 0.0, %v1983
    %v1985 = vpop.f32.mrb[0].mxu0
    %1986 = vdwg.mxu0
    %v1987 = vadd.f32 %v1910, %v1979
    %v1988 = vadd.f32 %v1911, %v1984
    %v1990 = vlaneseq
    %v1991 = vshrl.u32 %v1990, 7
    %v1992 = vsub.s32 0, %v1991
    %v1993 = vrot.slane %v1451, %v1992
    %v1995 = vadd.f32 %v1987, %v1993
    %v1996 = vadd.f32 %v1988, %v1993
    %1997 = vst [vmem:[%s8] sm:$0xff] %v1995
    %1998 = vst [vmem:[%s8 + $0x8] sm:$0xff] %v1996
    // Predicated region
    $region46: #{model_forward.1} parent=1 // pred_check
      _
    $region47: #{model_forward.1} parent=1 // pred_check_branch
      %2000 = sbr.rel (0) target = $region49
    $region48: #{model_forward.1} parent=1 // pred_region
      _
    $region49: #{model_forward.1} parent=1 // pred_fallthru
      _
    // Predicated region
    $region50: #{model_forward.1} parent=1 // pred_check
      _
    $region51: #{model_forward.1} parent=1 // pred_check_branch
      %2002 = sbr.rel (0) target = $region53
    $region52: #{model_forward.1} parent=1 // pred_region
      _
    $region53: #{model_forward.1} parent=1 // pred_fallthru
      _
    %2003 = vsyncpa [#allocation3], 1
    %2004 = vsyncpa [#allocation5], 1

</llo_original>
